<compile_context>
chip_gen: v7x
topology: tpu7x:2x2x1
jax: 0.10.0
libtpu: 0.0.40
codegen_flags: <defaults>
</compile_context>

<pallas_src>
import numpy as np
import jax
import jax.numpy as jnp
from jax import lax
from jax.experimental import pallas as pl
from jax.experimental.pallas import tpu as pltpu


# Lane assignment inside row 0 of the (8, 128) partial-sum tile.
_CE_SUM, _CE_W = 0, 1      # loss_labels   (weighted CE sum, weight sum)
_I1_SUM, _I1_W = 2, 3      # loss_idx1     (CE sum, valid-row count)
_I2_SUM, _I2_W = 4, 5      # loss_idx2
_TY_SUM, _TY_W = 6, 7      # loss_type     (CE over sigmoid(logits))
_KLD, _L1 = 8, 9
# Row 1 of the tile holds per-batch non-empty-prediction counts (lane b = batch b).


def _round_up(x, m):
    return ((x + m - 1) // m) * m


def _make_fused_kernel(*, G, TILE1, TILE2, Q, C1, C_idx, C_ty):
    """Fused criterion kernel over a (parallel, arbitrary) row-tiled grid."""
    f32 = jnp.float32

    def _ce_partial(x, tgt, lane_iota, weight_row=None, apply_sigmoid=False):
        """Softmax-CE partial sums in natural (rows, classes) layout.

        Rows whose target lies outside [0, C) (ignore_index=-1 and padded rows)
        contribute 0 to both the weighted loss sum and the weight sum.
        Returns ((1,1) loss_sum, (1,1) weight_sum).
        """
        x = x.astype(f32)
        if apply_sigmoid:                      # faithful to reference: CE(sigmoid(x))
            x = jax.nn.sigmoid(x)
        m = jnp.max(x, axis=-1, keepdims=True)                               # (T, 1)
        lse = m + jnp.log(jnp.sum(jnp.exp(x - m), axis=-1, keepdims=True))   # (T, 1)
        onehot = (lane_iota == tgt).astype(f32)                              # (T, C)
        picked = jnp.sum(onehot * x, axis=-1, keepdims=True)                 # (T, 1)
        if weight_row is None:
            c = x.shape[-1]
            wt = ((tgt >= 0) & (tgt < c)).astype(f32)                        # (T, 1)
        else:
            wt = jnp.sum(onehot * weight_row.astype(f32), axis=-1, keepdims=True)
        loss_sum = jnp.sum((lse - picked) * wt, keepdims=True)               # (1, 1)
        w_sum = jnp.sum(wt, keepdims=True)                                   # (1, 1)
        return loss_sum, w_sum

    def kernel(cls_lg_ref, cls_tg_ref, cls_w_ref,
               i1_lg_ref, i1_tg_ref, i2_lg_ref, i2_tg_ref,
               ty_lg_ref, ty_tg_ref,
               mu_ref, lv_ref, sp_ref, tp_ref,
               out_ref, acc_ref):
        s = pl.program_id(0)          # megacore split ("parallel")
        g = pl.program_id(1)          # row-tile index ("arbitrary")

        @pl.when(g == 0)
        def _():
            acc_ref[...] = jnp.zeros_like(acc_ref)

        col = lax.broadcasted_iota(jnp.int32, (1, 128), 1)

        # ---- four cross-entropies (natural (rows, classes) tiles) ----------
        cls_x = cls_lg_ref[...].astype(f32)                       # (TILE1, C1)
        cls_iota = lax.broadcasted_iota(jnp.int32, (TILE1, C1), 1)
        ce_s, ce_w = _ce_partial(cls_x, cls_tg_ref[...], cls_iota,
                                 weight_row=cls_w_ref[...])

        idx_iota = lax.broadcasted_iota(jnp.int32, (TILE2, C_idx), 1)   # shared i1/i2
        i1_s, i1_w = _ce_partial(i1_lg_ref[...], i1_tg_ref[...], idx_iota)
        i2_s, i2_w = _ce_partial(i2_lg_ref[...], i2_tg_ref[...], idx_iota)

        ty_iota = lax.broadcasted_iota(jnp.int32, (TILE2, C_ty), 1)
        ty_s, ty_w = _ce_partial(ty_lg_ref[...], ty_tg_ref[...], ty_iota,
                                 apply_sigmoid=True)

        scalars = (ce_s, ce_w, i1_s, i1_w, i2_s, i2_w, ty_s, ty_w)
        upd0 = jnp.zeros((1, 128), f32)
        for k, v in enumerate(scalars):
            upd0 = upd0 + jnp.where(col == k, v, 0.0)

        # ---- per-batch non-empty counts for the cardinality error ----------
        # argmax(-1) != background  <=>  max over non-background classes >= background.
        last = cls_x[:, C1 - 1:C1]                                 # (TILE1, 1)
        rest = jnp.max(cls_x[:, :C1 - 1], axis=-1, keepdims=True)  # (TILE1, 1)
        non_empty = (rest >= last).astype(f32)                     # (TILE1, 1)
        row = lax.broadcasted_iota(jnp.int32, (TILE1, 1), 0)
        grow = (s * G + g) * TILE1 + row                           # global row idx
        lane_b = lax.broadcasted_iota(jnp.int32, (1, 128), 1)
        in_batch = (grow >= lane_b * Q) & (grow < (lane_b + 1) * Q)    # (TILE1,128)
        counts = jnp.sum(jnp.where(in_batch, non_empty, 0.0),
                         axis=0, keepdims=True)                    # (1, 128)
        # Padded rows (grow >= B*Q) land on lanes >= B and are dropped host-side.

        # ---- small once-only losses (resident blocks, first step only) -----
        @pl.when((s == 0) & (g == 0))
        def _():
            mu = mu_ref[...].astype(f32)
            lv = lv_ref[...].astype(f32)
            kld = -0.5 * jnp.sum(1.0 + lv - mu * mu - jnp.exp(lv), keepdims=True)
            l1 = jnp.sum(jnp.abs(sp_ref[...].astype(f32) - tp_ref[...].astype(f32)),
                         keepdims=True)
            acc_ref[0:1, :] += (jnp.where(col == _KLD, kld, 0.0) +
                                jnp.where(col == _L1, l1, 0.0))

        acc_ref[0:1, :] += upd0
        acc_ref[1:2, :] += counts

        @pl.when(g == pl.num_programs(1) - 1)
        def _():
            out_ref[...] = acc_ref[...]

    return kernel


def fused_criterion_losses(cls_logits, cls_targets, cls_weight,
                           i1_logits, i1_targets, i2_logits, i2_targets,
                           ty_logits, ty_targets, means, logvars,
                           src_points, tgt_points, *, tile_rows=256):
    """One fused pallas_call computing every reduction loss.

    Returns an (8, 128) f32 tile: row 0 = scalar partial sums, row 1 = per-batch
    non-empty counts (cardinality is finalized on the host).
    """
    B, Q, C1 = cls_logits.shape
    _, E, C_idx = i1_logits.shape
    C_ty = ty_logits.shape[-1]
    assert C1 >= 2, "need at least one non-background class for cardinality"
    assert B <= 128, "per-batch cardinality counts live on the 128-lane axis"

    N1, N2 = B * Q, B * E

    # Unified row-tiled grid: S ('parallel' megacore split) x G ('arbitrary' tiles).
    tiles_needed = max(pl.cdiv(N1, tile_rows), pl.cdiv(N2, tile_rows), 1)
    S = 2 if tiles_needed >= 2 else 1
    G = pl.cdiv(tiles_needed, S)
    T = S * G
    TILE1 = _round_up(pl.cdiv(N1, T), 8)
    TILE2 = _round_up(pl.cdiv(N2, T), 8)
    N1p, N2p = TILE1 * T, TILE2 * T

    def prep(logits, targets, n_pad):
        lg = logits.reshape(-1, logits.shape[-1])          # free reshape, no transpose
        tg = targets.reshape(-1, 1).astype(jnp.int32)
        pad = n_pad - lg.shape[0]
        if pad:
            lg = jnp.pad(lg, ((0, pad), (0, 0)))
            tg = jnp.pad(tg, ((0, pad), (0, 0)), constant_values=-1)  # ignored rows
        return lg, tg

    cls_lg, cls_tg = prep(cls_logits, cls_targets, N1p)
    i1_lg, i1_tg = prep(i1_logits, i1_targets, N2p)
    i2_lg, i2_tg = prep(i2_logits, i2_targets, N2p)
    ty_lg, ty_tg = prep(ty_logits, ty_targets, N2p)
    w_row = cls_weight.reshape(1, C1).astype(jnp.float32)

    row1 = lambda s, g: (s * G + g, 0)     # row-tiled inputs
    const = lambda s, g: (0, 0)            # resident (loaded once) inputs

    in_specs = [
        pl.BlockSpec((TILE1, C1), row1),           # cls logits  (natural layout)
        pl.BlockSpec((TILE1, 1), row1),            # cls targets
        pl.BlockSpec((1, C1), const),              # empty_weight
        pl.BlockSpec((TILE2, C_idx), row1),        # idx1 logits
        pl.BlockSpec((TILE2, 1), row1),            # idx1 targets
        pl.BlockSpec((TILE2, C_idx), row1),        # idx2 logits
        pl.BlockSpec((TILE2, 1), row1),            # idx2 targets
        pl.BlockSpec((TILE2, C_ty), row1),         # type logits
        pl.BlockSpec((TILE2, 1), row1),            # type targets
        pl.BlockSpec(means.shape, const),          # means   (B, D)
        pl.BlockSpec(logvars.shape, const),        # logvars (B, D)
        pl.BlockSpec(src_points.shape, const),     # matched src points (M, P)
        pl.BlockSpec(tgt_points.shape, const),     # matched tgt points (M, P)
    ]
    out_spec = pl.BlockSpec((8, 128), lambda s, g: (s, 0))

    kernel = _make_fused_kernel(G=G, TILE1=TILE1, TILE2=TILE2,
                                Q=Q, C1=C1, C_idx=C_idx, C_ty=C_ty)

    out = pl.pallas_call(
        kernel,
        grid_spec=pltpu.PrefetchScalarGridSpec(
            num_scalar_prefetch=0,
            grid=(S, G),
            in_specs=in_specs,
            out_specs=out_spec,
            scratch_shapes=[pltpu.VMEM((8, 128), jnp.float32)]),
        out_shape=jax.ShapeDtypeStruct((S * 8, 128), jnp.float32),
        compiler_params=pltpu.CompilerParams(
            dimension_semantics=("parallel", "arbitrary"),
            vmem_limit_bytes=32 * 1024 * 1024),
    )(cls_lg, cls_tg, w_row, i1_lg, i1_tg, i2_lg, i2_tg, ty_lg, ty_tg,
      means, logvars, src_points, tgt_points)

    return jnp.sum(out.reshape(S, 8, 128), axis=0)    # (8, 128) partial-sum tile


# ----------------------------------------------------------------------------
# Criterion (forward semantics of Set_TRF_Criterion)
# ----------------------------------------------------------------------------
class SetTRFCriterionPallas:
    def __init__(self, num_classes, weight_dict, losses, edge_losses):
        self.num_classes = num_classes
        self.weight_dict = weight_dict
        self.losses = losses
        self.edge_losses = edge_losses
        # empty_weight = ones(num_classes + 1); empty_weight[-1] = 1  (all ones)
        self.empty_weight = jnp.ones((num_classes + 1,), jnp.float32)

    @staticmethod
    def _get_src_permutation_idx(indices):
        batch_idx = np.concatenate(
            [np.full(len(np.asarray(src)), i, dtype=np.int32)
             for i, (src, _) in enumerate(indices)])
        src_idx = np.concatenate([np.asarray(src) for src, _ in indices]).astype(np.int32)
        return batch_idx, src_idx

    def forward(self, outputs, targets, means, logvars, indices, edge_indices, trf_targets):
        src_logits = outputs['pred_logits']
        B, Q = src_logits.shape[:2]

        num_points = sum(len(t['labels']) for t in targets)
        num_points = max(float(num_points) / 1.0, 1.0)      # get_world_size() == 1

        # ----- node targets (host-side index bookkeeping, plain JAX glue) ----
        batch_idx, src_idx = self._get_src_permutation_idx(indices)
        target_classes_o = jnp.concatenate(
            [jnp.asarray(t['labels'])[np.asarray(J)]
             for t, (_, J) in zip(targets, indices)]).astype(jnp.int32)
        target_classes = jnp.full((B, Q), self.num_classes, dtype=jnp.int32)
        target_classes = target_classes.at[batch_idx, src_idx].set(target_classes_o)

        src_points = outputs['pred_points'][batch_idx, src_idx]
        target_points = jnp.concatenate(
            [jnp.asarray(t['points'])[np.asarray(i)]
             for t, (_, i) in zip(targets, indices)], axis=0)
        has_points = target_points.shape[0] > 0
        if not has_points:
            pdt = outputs['pred_points'].dtype
            src_points = jnp.zeros((1, 1), pdt)
            target_points = jnp.zeros((1, 1), pdt)

        tgt_lengths = jnp.asarray([len(t['labels']) for t in targets], dtype=jnp.float32)

        # ----- edge targets ---------------------------------------------------
        src_idx1 = outputs['pred_idx1']
        src_idx2 = outputs['pred_idx2']
        src_type = outputs['pred_type']
        e_batch_idx, e_src_idx = self._get_src_permutation_idx(edge_indices)
        c1 = jnp.concatenate([jnp.asarray(t['idx1_labels'])
                              for t, _ in zip(trf_targets, edge_indices)]).astype(jnp.int32)
        c2 = jnp.concatenate([jnp.asarray(t['idx2_labels'])
                              for t, _ in zip(trf_targets, edge_indices)]).astype(jnp.int32)
        t1 = jnp.full(src_idx1.shape[:2], -1, dtype=jnp.int32).at[e_batch_idx, e_src_idx].set(c1)
        t2 = jnp.full(src_idx2.shape[:2], -1, dtype=jnp.int32).at[e_batch_idx, e_src_idx].set(c2)
        ttype = jnp.zeros(src_type.shape[:2], dtype=jnp.int32).at[e_batch_idx, e_src_idx].set(1)

        # ----- ONE fused, row-tiled Pallas kernel for every reduction loss ----
        s_tile = fused_criterion_losses(
            src_logits, target_classes, self.empty_weight,
            src_idx1, t1, src_idx2, t2, src_type, ttype,
            means, logvars, src_points, target_points)
        scal = s_tile[0]            # (128,) scalar partial sums
        counts = s_tile[1]          # (128,) per-batch non-empty counts

        def safe_mean(loss_sum, w_sum):
            # guard all-ignored case (w_sum == 0) against 0/0 (torch would NaN here)
            return jnp.where(w_sum > 0, loss_sum / jnp.where(w_sum > 0, w_sum, 1.0), 0.0)

        card_err = jnp.mean(jnp.abs(counts[:B] - tgt_lengths))

        all_losses = {
            'loss_ce': safe_mean(scal[_CE_SUM], scal[_CE_W]),
            'cardinality_error': card_err,
            'loss_kld': scal[_KLD],
            'loss_idx1': safe_mean(scal[_I1_SUM], scal[_I1_W]),
            'loss_idx2': safe_mean(scal[_I2_SUM], scal[_I2_W]),
            'loss_type': safe_mean(scal[_TY_SUM], scal[_TY_W]),
            'loss_points': (scal[_L1] / num_points) if has_points else jnp.float32(0.0),
        }

        # class_error: tiny matched-query accuracy (logging only) in plain JAX.
        if batch_idx.size > 0:
            matched = src_logits[batch_idx, src_idx]
            pred = jnp.argmax(matched, axis=-1)
            acc = jnp.mean((pred == target_classes_o).astype(jnp.float32)) * 100.0
            all_losses['class_error'] = 100.0 - acc
        else:
            all_losses['class_error'] = jnp.float32(0.0)

        key_map = {
            'labels': ('loss_ce', 'class_error'),
            'cardinality': ('cardinality_error',),
            'points': ('loss_points',),
            'kld': ('loss_kld',),
            'edge_target': ('loss_idx1', 'loss_idx2'),
            'edge_type': ('loss_type',),
        }
        losses = {}
        for name in list(self.losses) + list(self.edge_losses):
            for k in key_map[name]:
                losses[k] = all_losses[k]
        return losses


# ----------------------------------------------------------------------------
# Example / self-test
# ----------------------------------------------------------------------------
if __name__ == "__main__":
    key = jax.random.PRNGKey(0)
    B, Q, num_classes, P, E, D = 2, 8, 4, 3, 6, 16

    k = jax.random.split(key, 10)
    outputs = {
        'pred_logits': jax.random.normal(k[0], (B, Q, num_classes + 1), jnp.float32),
        'pred_points': jax.random.uniform(k[1], (B, Q, P), jnp.float32),
        'pred_idx1':   jax.random.normal(k[2], (B, E, Q), jnp.float32),
        'pred_idx2':   jax.random.normal(k[3], (B, E, Q), jnp.float32),
        'pred_type':   jax.random.normal(k[4], (B, E, 2), jnp.float32),
    }
    means = jax.random.normal(k[5], (B, D), jnp.float32)
    logvars = 0.1 * jax.random.normal(k[6], (B, D), jnp.float32)

    targets = [
        {'labels': jax.random.randint(k[7], (3,), 0, num_classes),
         'points': jax.random.uniform(k[8], (3, P), jnp.float32)},
        {'labels': jax.random.randint(k[9], (2,), 0, num_classes),
         'points': jax.random.uniform(k[0], (2, P), jnp.float32)},
    ]
    # deterministic (synthetic) Hungarian match: (pred_query_idx, target_idx) per batch
    indices = [(np.array([0, 2, 4]), np.array([2, 0, 1])),
               (np.array([1, 5]), np.array([1, 0]))]
    # deterministic synthetic edge matching + TRF targets
    edge_indices = [(np.array([0, 3]), np.array([0, 1])),
                    (np.array([2]), np.array([0]))]
    trf_targets = [
        {'idx1_labels': jnp.asarray([1, 4], jnp.int32),
         'idx2_labels': jnp.asarray([2, 5], jnp.int32)},
        {'idx1_labels': jnp.asarray([3], jnp.int32),
         'idx2_labels': jnp.asarray([6], jnp.int32)},
    ]

    criterion = SetTRFCriterionPallas(
        num_classes=num_classes,
        weight_dict={'loss_ce': 1.0, 'loss_points': 5.0, 'loss_kld': 0.1,
                     'loss_idx1': 1.0, 'loss_idx2': 1.0, 'loss_type': 1.0},
        losses=['labels', 'cardinality', 'points', 'kld'],
        edge_losses=['edge_target', 'edge_type'],
    )

    losses = criterion.forward(outputs, targets, means, logvars,
                               indices, edge_indices, trf_targets)
    for v in losses.values():
        if isinstance(v, jnp.ndarray):
            jax.block_until_ready(v)
    print("KERNEL_OK")
</pallas_src>

<mosaic_0001>
module attributes {stable_mosaic.version = 11 : i64} {
  func.func @kernel(%arg0: i32, %arg1: i32, %arg2: memref<16x5xf32, #tpu.memory_space<vmem>>, %arg3: memref<16x1xi32, #tpu.memory_space<vmem>>, %arg4: memref<1x5xf32, #tpu.memory_space<vmem>>, %arg5: memref<16x8xf32, #tpu.memory_space<vmem>>, %arg6: memref<16x1xi32, #tpu.memory_space<vmem>>, %arg7: memref<16x8xf32, #tpu.memory_space<vmem>>, %arg8: memref<16x1xi32, #tpu.memory_space<vmem>>, %arg9: memref<16x2xf32, #tpu.memory_space<vmem>>, %arg10: memref<16x1xi32, #tpu.memory_space<vmem>>, %arg11: memref<2x16xf32, #tpu.memory_space<vmem>>, %arg12: memref<2x16xf32, #tpu.memory_space<vmem>>, %arg13: memref<5x3xf32, #tpu.memory_space<vmem>>, %arg14: memref<5x3xf32, #tpu.memory_space<vmem>>, %arg15: memref<8x128xf32, #tpu.memory_space<vmem>>, %arg16: memref<8x128xf32, #tpu.memory_space<vmem>>) attributes {dimension_semantics = [#tpu.dimension_semantics<parallel>, #tpu.dimension_semantics<arbitrary>], iteration_bounds = array<i64: 1, 1>, scalar_prefetch = 0 : i64, scratch_operands = 1 : i64, tpu.core_type = #tpu.core_type<tc>, window_params = [{transform_indices = @transform_0, window_bounds = array<i64: 16, 5>}, {transform_indices = @transform_1, window_bounds = array<i64: 16, 1>}, {pipeline_mode = #tpu.pipeline_mode<synchronous>, transform_indices = @transform_2, window_bounds = array<i64: 1, 5>}, {transform_indices = @transform_3, window_bounds = array<i64: 16, 8>}, {transform_indices = @transform_4, window_bounds = array<i64: 16, 1>}, {transform_indices = @transform_5, window_bounds = array<i64: 16, 8>}, {transform_indices = @transform_6, window_bounds = array<i64: 16, 1>}, {transform_indices = @transform_7, window_bounds = array<i64: 16, 2>}, {transform_indices = @transform_8, window_bounds = array<i64: 16, 1>}, {pipeline_mode = #tpu.pipeline_mode<synchronous>, transform_indices = @transform_9, window_bounds = array<i64: 2, 16>}, {pipeline_mode = #tpu.pipeline_mode<synchronous>, transform_indices = @transform_10, window_bounds = array<i64: 2, 16>}, {pipeline_mode = #tpu.pipeline_mode<synchronous>, transform_indices = @transform_11, window_bounds = array<i64: 5, 3>}, {pipeline_mode = #tpu.pipeline_mode<synchronous>, transform_indices = @transform_12, window_bounds = array<i64: 5, 3>}, {transform_indices = @transform_13, window_bounds = array<i64: 8, 128>}]} {
    %c0_i32 = arith.constant 0 : i32
    %0 = arith.cmpi eq, %arg1, %c0_i32 : i32
    %1 = arith.extui %0 : i1 to i32
    %c0_i32_0 = arith.constant 0 : i32
    %2 = arith.cmpi ne, %1, %c0_i32_0 : i32
    scf.if %2 {
      %cst_73 = arith.constant 0.000000e+00 : f32
      %262 = vector.broadcast %cst_73 : f32 to vector<8x128xf32>
      %c0_74 = arith.constant 0 : index
      %c0_75 = arith.constant 0 : index
      %263 = vector.load %arg16[%c0_74, %c0_75] : memref<8x128xf32, #tpu.memory_space<vmem>>, vector<8x128xf32>
      tpu.vector_store %arg16[%c0_74, %c0_75], %262 {strides = array<i32>} : memref<8x128xf32, #tpu.memory_space<vmem>>, vector<8x128xf32>,
    } else {
    }
    %3 = tpu.iota {dimensions = array<i32: 1>} : vector<1x128xi32>
    %c0 = arith.constant 0 : index
    %c0_1 = arith.constant 0 : index
    %4 = vector.load %arg2[%c0, %c0_1] : memref<16x5xf32, #tpu.memory_space<vmem>>, vector<16x5xf32>
    %5 = tpu.iota {dimensions = array<i32: 1>} : vector<16x5xi32>
    %c0_2 = arith.constant 0 : index
    %c0_3 = arith.constant 0 : index
    %6 = vector.load %arg3[%c0_2, %c0_3] : memref<16x1xi32, #tpu.memory_space<vmem>>, vector<16x1xi32>
    %c0_4 = arith.constant 0 : index
    %c0_5 = arith.constant 0 : index
    %7 = vector.load %arg4[%c0_4, %c0_5] : memref<1x5xf32, #tpu.memory_space<vmem>>, vector<1x5xf32>
    %cst = arith.constant dense<0xFF800000> : vector<16xf32>
    %8 = vector.multi_reduction <maximumf>, %4, %cst [1] : vector<16x5xf32> to vector<16xf32>
    %9 = vector.shape_cast %8 : vector<16xf32> to vector<16x1xf32>
    %10 = vector.broadcast %9 : vector<16x1xf32> to vector<16x5xf32>
    %11 = arith.subf %4, %10 : vector<16x5xf32>
    %12 = math.exp %11 : vector<16x5xf32>
    %cst_6 = arith.constant dense<0.000000e+00> : vector<16xf32>
    %13 = vector.multi_reduction <add>, %12, %cst_6 [1] : vector<16x5xf32> to vector<16xf32>
    %14 = vector.shape_cast %13 : vector<16xf32> to vector<16x1xf32>
    %15 = math.log %14 : vector<16x1xf32>
    %16 = arith.addf %9, %15 : vector<16x1xf32>
    %17 = vector.broadcast %6 : vector<16x1xi32> to vector<16x5xi32>
    %18 = arith.cmpi eq, %5, %17 : vector<16x5xi32>
    %19 = arith.extui %18 : vector<16x5xi1> to vector<16x5xi32>
    %20 = arith.sitofp %19 : vector<16x5xi32> to vector<16x5xf32>
    %21 = arith.mulf %20, %4 : vector<16x5xf32>
    %cst_7 = arith.constant dense<0.000000e+00> : vector<16xf32>
    %22 = vector.multi_reduction <add>, %21, %cst_7 [1] : vector<16x5xf32> to vector<16xf32>
    %23 = vector.shape_cast %22 : vector<16xf32> to vector<16x1xf32>
    %24 = vector.broadcast %7 : vector<1x5xf32> to vector<16x5xf32>
    %25 = arith.mulf %20, %24 : vector<16x5xf32>
    %cst_8 = arith.constant dense<0.000000e+00> : vector<16xf32>
    %26 = vector.multi_reduction <add>, %25, %cst_8 [1] : vector<16x5xf32> to vector<16xf32>
    %27 = vector.shape_cast %26 : vector<16xf32> to vector<16x1xf32>
    %28 = arith.subf %16, %23 : vector<16x1xf32>
    %29 = arith.mulf %28, %27 : vector<16x1xf32>
    %30 = vector.shape_cast %29 : vector<16x1xf32> to vector<1x16x1xf32>
    %cst_9 = arith.constant dense<0.000000e+00> : vector<1xf32>
    %31 = vector.multi_reduction <add>, %30, %cst_9 [1, 2] : vector<1x16x1xf32> to vector<1xf32>
    %32 = vector.shape_cast %31 : vector<1xf32> to vector<1x1x1xf32>
    %33 = vector.extract %32[0, 0, 0] : f32 from vector<1x1x1xf32>
    %34 = vector.broadcast %33 : f32 to vector<1x1xf32>
    %35 = vector.shape_cast %27 : vector<16x1xf32> to vector<1x16x1xf32>
    %cst_10 = arith.constant dense<0.000000e+00> : vector<1xf32>
    %36 = vector.multi_reduction <add>, %35, %cst_10 [1, 2] : vector<1x16x1xf32> to vector<1xf32>
    %37 = vector.shape_cast %36 : vector<1xf32> to vector<1x1x1xf32>
    %38 = vector.extract %37[0, 0, 0] : f32 from vector<1x1x1xf32>
    %39 = vector.broadcast %38 : f32 to vector<1x1xf32>
    %40 = tpu.iota {dimensions = array<i32: 1>} : vector<16x8xi32>
    %c0_11 = arith.constant 0 : index
    %c0_12 = arith.constant 0 : index
    %41 = vector.load %arg5[%c0_11, %c0_12] : memref<16x8xf32, #tpu.memory_space<vmem>>, vector<16x8xf32>
    %c0_13 = arith.constant 0 : index
    %c0_14 = arith.constant 0 : index
    %42 = vector.load %arg6[%c0_13, %c0_14] : memref<16x1xi32, #tpu.memory_space<vmem>>, vector<16x1xi32>
    %cst_15 = arith.constant dense<0xFF800000> : vector<16xf32>
    %43 = vector.multi_reduction <maximumf>, %41, %cst_15 [1] : vector<16x8xf32> to vector<16xf32>
    %44 = vector.shape_cast %43 : vector<16xf32> to vector<16x1xf32>
    %45 = vector.broadcast %44 : vector<16x1xf32> to vector<16x8xf32>
    %46 = arith.subf %41, %45 : vector<16x8xf32>
    %47 = math.exp %46 : vector<16x8xf32>
    %cst_16 = arith.constant dense<0.000000e+00> : vector<16xf32>
    %48 = vector.multi_reduction <add>, %47, %cst_16 [1] : vector<16x8xf32> to vector<16xf32>
    %49 = vector.shape_cast %48 : vector<16xf32> to vector<16x1xf32>
    %50 = math.log %49 : vector<16x1xf32>
    %51 = arith.addf %44, %50 : vector<16x1xf32>
    %52 = vector.broadcast %42 : vector<16x1xi32> to vector<16x8xi32>
    %53 = arith.cmpi eq, %40, %52 : vector<16x8xi32>
    %54 = arith.extui %53 : vector<16x8xi1> to vector<16x8xi32>
    %55 = arith.sitofp %54 : vector<16x8xi32> to vector<16x8xf32>
    %56 = arith.mulf %55, %41 : vector<16x8xf32>
    %cst_17 = arith.constant dense<0.000000e+00> : vector<16xf32>
    %57 = vector.multi_reduction <add>, %56, %cst_17 [1] : vector<16x8xf32> to vector<16xf32>
    %58 = vector.shape_cast %57 : vector<16xf32> to vector<16x1xf32>
    %c0_i32_18 = arith.constant 0 : i32
    %59 = vector.broadcast %c0_i32_18 : i32 to vector<16x1xi32>
    %60 = arith.cmpi sge, %42, %59 : vector<16x1xi32>
    %c8_i32 = arith.constant 8 : i32
    %61 = vector.broadcast %c8_i32 : i32 to vector<16x1xi32>
    %62 = arith.cmpi slt, %42, %61 : vector<16x1xi32>
    %63 = arith.andi %60, %62 : vector<16x1xi1>
    %64 = arith.extui %63 : vector<16x1xi1> to vector<16x1xi32>
    %65 = arith.sitofp %64 : vector<16x1xi32> to vector<16x1xf32>
    %66 = arith.subf %51, %58 : vector<16x1xf32>
    %67 = arith.mulf %66, %65 : vector<16x1xf32>
    %68 = vector.shape_cast %67 : vector<16x1xf32> to vector<1x16x1xf32>
    %cst_19 = arith.constant dense<0.000000e+00> : vector<1xf32>
    %69 = vector.multi_reduction <add>, %68, %cst_19 [1, 2] : vector<1x16x1xf32> to vector<1xf32>
    %70 = vector.shape_cast %69 : vector<1xf32> to vector<1x1x1xf32>
    %71 = vector.extract %70[0, 0, 0] : f32 from vector<1x1x1xf32>
    %72 = vector.broadcast %71 : f32 to vector<1x1xf32>
    %73 = vector.shape_cast %65 : vector<16x1xf32> to vector<1x16x1xf32>
    %cst_20 = arith.constant dense<0.000000e+00> : vector<1xf32>
    %74 = vector.multi_reduction <add>, %73, %cst_20 [1, 2] : vector<1x16x1xf32> to vector<1xf32>
    %75 = vector.shape_cast %74 : vector<1xf32> to vector<1x1x1xf32>
    %76 = vector.extract %75[0, 0, 0] : f32 from vector<1x1x1xf32>
    %77 = vector.broadcast %76 : f32 to vector<1x1xf32>
    %c0_21 = arith.constant 0 : index
    %c0_22 = arith.constant 0 : index
    %78 = vector.load %arg7[%c0_21, %c0_22] : memref<16x8xf32, #tpu.memory_space<vmem>>, vector<16x8xf32>
    %c0_23 = arith.constant 0 : index
    %c0_24 = arith.constant 0 : index
    %79 = vector.load %arg8[%c0_23, %c0_24] : memref<16x1xi32, #tpu.memory_space<vmem>>, vector<16x1xi32>
    %cst_25 = arith.constant dense<0xFF800000> : vector<16xf32>
    %80 = vector.multi_reduction <maximumf>, %78, %cst_25 [1] : vector<16x8xf32> to vector<16xf32>
    %81 = vector.shape_cast %80 : vector<16xf32> to vector<16x1xf32>
    %82 = vector.broadcast %81 : vector<16x1xf32> to vector<16x8xf32>
    %83 = arith.subf %78, %82 : vector<16x8xf32>
    %84 = math.exp %83 : vector<16x8xf32>
    %cst_26 = arith.constant dense<0.000000e+00> : vector<16xf32>
    %85 = vector.multi_reduction <add>, %84, %cst_26 [1] : vector<16x8xf32> to vector<16xf32>
    %86 = vector.shape_cast %85 : vector<16xf32> to vector<16x1xf32>
    %87 = math.log %86 : vector<16x1xf32>
    %88 = arith.addf %81, %87 : vector<16x1xf32>
    %89 = vector.broadcast %79 : vector<16x1xi32> to vector<16x8xi32>
    %90 = arith.cmpi eq, %40, %89 : vector<16x8xi32>
    %91 = arith.extui %90 : vector<16x8xi1> to vector<16x8xi32>
    %92 = arith.sitofp %91 : vector<16x8xi32> to vector<16x8xf32>
    %93 = arith.mulf %92, %78 : vector<16x8xf32>
    %cst_27 = arith.constant dense<0.000000e+00> : vector<16xf32>
    %94 = vector.multi_reduction <add>, %93, %cst_27 [1] : vector<16x8xf32> to vector<16xf32>
    %95 = vector.shape_cast %94 : vector<16xf32> to vector<16x1xf32>
    %c0_i32_28 = arith.constant 0 : i32
    %96 = vector.broadcast %c0_i32_28 : i32 to vector<16x1xi32>
    %97 = arith.cmpi sge, %79, %96 : vector<16x1xi32>
    %c8_i32_29 = arith.constant 8 : i32
    %98 = vector.broadcast %c8_i32_29 : i32 to vector<16x1xi32>
    %99 = arith.cmpi slt, %79, %98 : vector<16x1xi32>
    %100 = arith.andi %97, %99 : vector<16x1xi1>
    %101 = arith.extui %100 : vector<16x1xi1> to vector<16x1xi32>
    %102 = arith.sitofp %101 : vector<16x1xi32> to vector<16x1xf32>
    %103 = arith.subf %88, %95 : vector<16x1xf32>
    %104 = arith.mulf %103, %102 : vector<16x1xf32>
    %105 = vector.shape_cast %104 : vector<16x1xf32> to vector<1x16x1xf32>
    %cst_30 = arith.constant dense<0.000000e+00> : vector<1xf32>
    %106 = vector.multi_reduction <add>, %105, %cst_30 [1, 2] : vector<1x16x1xf32> to vector<1xf32>
    %107 = vector.shape_cast %106 : vector<1xf32> to vector<1x1x1xf32>
    %108 = vector.extract %107[0, 0, 0] : f32 from vector<1x1x1xf32>
    %109 = vector.broadcast %108 : f32 to vector<1x1xf32>
    %110 = vector.shape_cast %102 : vector<16x1xf32> to vector<1x16x1xf32>
    %cst_31 = arith.constant dense<0.000000e+00> : vector<1xf32>
    %111 = vector.multi_reduction <add>, %110, %cst_31 [1, 2] : vector<1x16x1xf32> to vector<1xf32>
    %112 = vector.shape_cast %111 : vector<1xf32> to vector<1x1x1xf32>
    %113 = vector.extract %112[0, 0, 0] : f32 from vector<1x1x1xf32>
    %114 = vector.broadcast %113 : f32 to vector<1x1xf32>
    %115 = tpu.iota {dimensions = array<i32: 1>} : vector<16x2xi32>
    %c0_32 = arith.constant 0 : index
    %c0_33 = arith.constant 0 : index
    %116 = vector.load %arg9[%c0_32, %c0_33] : memref<16x2xf32, #tpu.memory_space<vmem>>, vector<16x2xf32>
    %c0_34 = arith.constant 0 : index
    %c0_35 = arith.constant 0 : index
    %117 = vector.load %arg10[%c0_34, %c0_35] : memref<16x1xi32, #tpu.memory_space<vmem>>, vector<16x1xi32>
    %118 = arith.negf %116 : vector<16x2xf32>
    %119 = math.exp %118 : vector<16x2xf32>
    %cst_36 = arith.constant 1.000000e+00 : f32
    %120 = vector.broadcast %cst_36 : f32 to vector<16x2xf32>
    %121 = arith.addf %120, %119 : vector<16x2xf32>
    %122 = arith.divf %120, %121 : vector<16x2xf32>
    %cst_37 = arith.constant dense<0xFF800000> : vector<16xf32>
    %123 = vector.multi_reduction <maximumf>, %122, %cst_37 [1] : vector<16x2xf32> to vector<16xf32>
    %124 = vector.shape_cast %123 : vector<16xf32> to vector<16x1xf32>
    %125 = vector.broadcast %124 : vector<16x1xf32> to vector<16x2xf32>
    %126 = arith.subf %122, %125 : vector<16x2xf32>
    %127 = math.exp %126 : vector<16x2xf32>
    %cst_38 = arith.constant dense<0.000000e+00> : vector<16xf32>
    %128 = vector.multi_reduction <add>, %127, %cst_38 [1] : vector<16x2xf32> to vector<16xf32>
    %129 = vector.shape_cast %128 : vector<16xf32> to vector<16x1xf32>
    %130 = math.log %129 : vector<16x1xf32>
    %131 = arith.addf %124, %130 : vector<16x1xf32>
    %132 = vector.broadcast %117 : vector<16x1xi32> to vector<16x2xi32>
    %133 = arith.cmpi eq, %115, %132 : vector<16x2xi32>
    %134 = arith.extui %133 : vector<16x2xi1> to vector<16x2xi32>
    %135 = arith.sitofp %134 : vector<16x2xi32> to vector<16x2xf32>
    %136 = arith.mulf %135, %122 : vector<16x2xf32>
    %cst_39 = arith.constant dense<0.000000e+00> : vector<16xf32>
    %137 = vector.multi_reduction <add>, %136, %cst_39 [1] : vector<16x2xf32> to vector<16xf32>
    %138 = vector.shape_cast %137 : vector<16xf32> to vector<16x1xf32>
    %c0_i32_40 = arith.constant 0 : i32
    %139 = vector.broadcast %c0_i32_40 : i32 to vector<16x1xi32>
    %140 = arith.cmpi sge, %117, %139 : vector<16x1xi32>
    %c2_i32 = arith.constant 2 : i32
    %141 = vector.broadcast %c2_i32 : i32 to vector<16x1xi32>
    %142 = arith.cmpi slt, %117, %141 : vector<16x1xi32>
    %143 = arith.andi %140, %142 : vector<16x1xi1>
    %144 = arith.extui %143 : vector<16x1xi1> to vector<16x1xi32>
    %145 = arith.sitofp %144 : vector<16x1xi32> to vector<16x1xf32>
    %146 = arith.subf %131, %138 : vector<16x1xf32>
    %147 = arith.mulf %146, %145 : vector<16x1xf32>
    %148 = vector.shape_cast %147 : vector<16x1xf32> to vector<1x16x1xf32>
    %cst_41 = arith.constant dense<0.000000e+00> : vector<1xf32>
    %149 = vector.multi_reduction <add>, %148, %cst_41 [1, 2] : vector<1x16x1xf32> to vector<1xf32>
    %150 = vector.shape_cast %149 : vector<1xf32> to vector<1x1x1xf32>
    %151 = vector.extract %150[0, 0, 0] : f32 from vector<1x1x1xf32>
    %152 = vector.broadcast %151 : f32 to vector<1x1xf32>
    %153 = vector.shape_cast %145 : vector<16x1xf32> to vector<1x16x1xf32>
    %cst_42 = arith.constant dense<0.000000e+00> : vector<1xf32>
    %154 = vector.multi_reduction <add>, %153, %cst_42 [1, 2] : vector<1x16x1xf32> to vector<1xf32>
    %155 = vector.shape_cast %154 : vector<1xf32> to vector<1x1x1xf32>
    %156 = vector.extract %155[0, 0, 0] : f32 from vector<1x1x1xf32>
    %157 = vector.broadcast %156 : f32 to vector<1x1xf32>
    %cst_43 = arith.constant 0.000000e+00 : f32
    %158 = vector.broadcast %cst_43 : f32 to vector<1x128xf32>
    %c0_i32_44 = arith.constant 0 : i32
    %159 = vector.broadcast %c0_i32_44 : i32 to vector<1x128xi32>
    %160 = arith.cmpi eq, %3, %159 : vector<1x128xi32>
    %cst_45 = arith.constant 0.000000e+00 : f32
    %161 = vector.shape_cast %34 : vector<1x1xf32> to vector<1x1xf32>
    %162 = vector.broadcast %161 : vector<1x1xf32> to vector<1x128xf32>
    %163 = vector.broadcast %cst_45 : f32 to vector<1x128xf32>
    %164 = arith.select %160, %162, %163 : vector<1x128xi1>, vector<1x128xf32>
    %165 = arith.addf %158, %164 : vector<1x128xf32>
    %c1_i32 = arith.constant 1 : i32
    %166 = vector.broadcast %c1_i32 : i32 to vector<1x128xi32>
    %167 = arith.cmpi eq, %3, %166 : vector<1x128xi32>
    %cst_46 = arith.constant 0.000000e+00 : f32
    %168 = vector.shape_cast %39 : vector<1x1xf32> to vector<1x1xf32>
    %169 = vector.broadcast %168 : vector<1x1xf32> to vector<1x128xf32>
    %170 = vector.broadcast %cst_46 : f32 to vector<1x128xf32>
    %171 = arith.select %167, %169, %170 : vector<1x128xi1>, vector<1x128xf32>
    %172 = arith.addf %165, %171 : vector<1x128xf32>
    %c2_i32_47 = arith.constant 2 : i32
    %173 = vector.broadcast %c2_i32_47 : i32 to vector<1x128xi32>
    %174 = arith.cmpi eq, %3, %173 : vector<1x128xi32>
    %cst_48 = arith.constant 0.000000e+00 : f32
    %175 = vector.shape_cast %72 : vector<1x1xf32> to vector<1x1xf32>
    %176 = vector.broadcast %175 : vector<1x1xf32> to vector<1x128xf32>
    %177 = vector.broadcast %cst_48 : f32 to vector<1x128xf32>
    %178 = arith.select %174, %176, %177 : vector<1x128xi1>, vector<1x128xf32>
    %179 = arith.addf %172, %178 : vector<1x128xf32>
    %c3_i32 = arith.constant 3 : i32
    %180 = vector.broadcast %c3_i32 : i32 to vector<1x128xi32>
    %181 = arith.cmpi eq, %3, %180 : vector<1x128xi32>
    %cst_49 = arith.constant 0.000000e+00 : f32
    %182 = vector.shape_cast %77 : vector<1x1xf32> to vector<1x1xf32>
    %183 = vector.broadcast %182 : vector<1x1xf32> to vector<1x128xf32>
    %184 = vector.broadcast %cst_49 : f32 to vector<1x128xf32>
    %185 = arith.select %181, %183, %184 : vector<1x128xi1>, vector<1x128xf32>
    %186 = arith.addf %179, %185 : vector<1x128xf32>
    %c4_i32 = arith.constant 4 : i32
    %187 = vector.broadcast %c4_i32 : i32 to vector<1x128xi32>
    %188 = arith.cmpi eq, %3, %187 : vector<1x128xi32>
    %cst_50 = arith.constant 0.000000e+00 : f32
    %189 = vector.shape_cast %109 : vector<1x1xf32> to vector<1x1xf32>
    %190 = vector.broadcast %189 : vector<1x1xf32> to vector<1x128xf32>
    %191 = vector.broadcast %cst_50 : f32 to vector<1x128xf32>
    %192 = arith.select %188, %190, %191 : vector<1x128xi1>, vector<1x128xf32>
    %193 = arith.addf %186, %192 : vector<1x128xf32>
    %c5_i32 = arith.constant 5 : i32
    %194 = vector.broadcast %c5_i32 : i32 to vector<1x128xi32>
    %195 = arith.cmpi eq, %3, %194 : vector<1x128xi32>
    %cst_51 = arith.constant 0.000000e+00 : f32
    %196 = vector.shape_cast %114 : vector<1x1xf32> to vector<1x1xf32>
    %197 = vector.broadcast %196 : vector<1x1xf32> to vector<1x128xf32>
    %198 = vector.broadcast %cst_51 : f32 to vector<1x128xf32>
    %199 = arith.select %195, %197, %198 : vector<1x128xi1>, vector<1x128xf32>
    %200 = arith.addf %193, %199 : vector<1x128xf32>
    %c6_i32 = arith.constant 6 : i32
    %201 = vector.broadcast %c6_i32 : i32 to vector<1x128xi32>
    %202 = arith.cmpi eq, %3, %201 : vector<1x128xi32>
    %cst_52 = arith.constant 0.000000e+00 : f32
    %203 = vector.shape_cast %152 : vector<1x1xf32> to vector<1x1xf32>
    %204 = vector.broadcast %203 : vector<1x1xf32> to vector<1x128xf32>
    %205 = vector.broadcast %cst_52 : f32 to vector<1x128xf32>
    %206 = arith.select %202, %204, %205 : vector<1x128xi1>, vector<1x128xf32>
    %207 = arith.addf %200, %206 : vector<1x128xf32>
    %c7_i32 = arith.constant 7 : i32
    %208 = vector.broadcast %c7_i32 : i32 to vector<1x128xi32>
    %209 = arith.cmpi eq, %3, %208 : vector<1x128xi32>
    %cst_53 = arith.constant 0.000000e+00 : f32
    %210 = vector.shape_cast %157 : vector<1x1xf32> to vector<1x1xf32>
    %211 = vector.broadcast %210 : vector<1x1xf32> to vector<1x128xf32>
    %212 = vector.broadcast %cst_53 : f32 to vector<1x128xf32>
    %213 = arith.select %209, %211, %212 : vector<1x128xi1>, vector<1x128xf32>
    %214 = arith.addf %207, %213 : vector<1x128xf32>
    %215 = vector.extract_strided_slice %4 {offsets = [0, 4], sizes = [16, 1], strides = [1, 1]} : vector<16x5xf32> to vector<16x1xf32>
    %216 = vector.extract_strided_slice %4 {offsets = [0, 0], sizes = [16, 4], strides = [1, 1]} : vector<16x5xf32> to vector<16x4xf32>
    %cst_54 = arith.constant dense<0xFF800000> : vector<16xf32>
    %217 = vector.multi_reduction <maximumf>, %216, %cst_54 [1] : vector<16x4xf32> to vector<16xf32>
    %218 = vector.shape_cast %217 : vector<16xf32> to vector<16x1xf32>
    %219 = arith.cmpf oge, %218, %215 : vector<16x1xf32>
    %220 = arith.extui %219 : vector<16x1xi1> to vector<16x1xi32>
    %221 = arith.sitofp %220 : vector<16x1xi32> to vector<16x1xf32>
    %222 = tpu.iota {dimensions = array<i32: 0>} : vector<16x1xi32>
    %c1_i32_55 = arith.constant 1 : i32
    %223 = arith.muli %arg0, %c1_i32_55 : i32
    %224 = arith.addi %223, %arg1 : i32
    %c16_i32 = arith.constant 16 : i32
    %225 = arith.muli %224, %c16_i32 : i32
    %226 = vector.broadcast %225 : i32 to vector<16x1xi32>
    %227 = arith.addi %226, %222 : vector<16x1xi32>
    %228 = tpu.iota {dimensions = array<i32: 1>} : vector<1x128xi32>
    %c8_i32_56 = arith.constant 8 : i32
    %229 = vector.broadcast %c8_i32_56 : i32 to vector<1x128xi32>
    %230 = arith.muli %228, %229 : vector<1x128xi32>
    %231 = vector.broadcast %227 : vector<16x1xi32> to vector<16x128xi32>
    %232 = vector.broadcast %230 : vector<1x128xi32> to vector<16x128xi32>
    %233 = arith.cmpi sge, %231, %232 : vector<16x128xi32>
    %c1_i32_57 = arith.constant 1 : i32
    %234 = vector.broadcast %c1_i32_57 : i32 to vector<1x128xi32>
    %235 = arith.addi %228, %234 : vector<1x128xi32>
    %c8_i32_58 = arith.constant 8 : i32
    %236 = vector.broadcast %c8_i32_58 : i32 to vector<1x128xi32>
    %237 = arith.muli %235, %236 : vector<1x128xi32>
    %238 = vector.broadcast %227 : vector<16x1xi32> to vector<16x128xi32>
    %239 = vector.broadcast %237 : vector<1x128xi32> to vector<16x128xi32>
    %240 = arith.cmpi slt, %238, %239 : vector<16x128xi32>
    %241 = arith.andi %233, %240 : vector<16x128xi1>
    %cst_59 = arith.constant 0.000000e+00 : f32
    %242 = vector.shape_cast %221 : vector<16x1xf32> to vector<16x1xf32>
    %243 = vector.broadcast %242 : vector<16x1xf32> to vector<16x128xf32>
    %244 = vector.broadcast %cst_59 : f32 to vector<16x128xf32>
    %245 = arith.select %241, %243, %244 : vector<16x128xi1>, vector<16x128xf32>
    %cst_60 = arith.constant dense<0.000000e+00> : vector<128xf32>
    %246 = vector.multi_reduction <add>, %245, %cst_60 [0] : vector<16x128xf32> to vector<128xf32>
    %247 = vector.shape_cast %246 : vector<128xf32> to vector<1x128xf32>
    %c0_i32_61 = arith.constant 0 : i32
    %248 = arith.cmpi eq, %arg0, %c0_i32_61 : i32
    %c0_i32_62 = arith.constant 0 : i32
    %249 = arith.cmpi eq, %arg1, %c0_i32_62 : i32
    %250 = arith.andi %248, %249 : i1
    %251 = arith.extui %250 : i1 to i32
    %c0_i32_63 = arith.constant 0 : i32
    %252 = arith.cmpi ne, %251, %c0_i32_63 : i32
    scf.if %252 {
      %c0_73 = arith.constant 0 : index
      %c0_74 = arith.constant 0 : index
      %262 = vector.load %arg11[%c0_73, %c0_74] : memref<2x16xf32, #tpu.memory_space<vmem>>, vector<2x16xf32>
      %c0_75 = arith.constant 0 : index
      %c0_76 = arith.constant 0 : index
      %263 = vector.load %arg12[%c0_75, %c0_76] : memref<2x16xf32, #tpu.memory_space<vmem>>, vector<2x16xf32>
      %cst_77 = arith.constant 1.000000e+00 : f32
      %264 = vector.broadcast %cst_77 : f32 to vector<2x16xf32>
      %265 = arith.addf %264, %263 : vector<2x16xf32>
      %266 = arith.mulf %262, %262 : vector<2x16xf32>
      %267 = arith.subf %265, %266 : vector<2x16xf32>
      %268 = math.exp %263 : vector<2x16xf32>
      %269 = arith.subf %267, %268 : vector<2x16xf32>
      %270 = vector.shape_cast %269 : vector<2x16xf32> to vector<1x2x16xf32>
      %cst_78 = arith.constant dense<0.000000e+00> : vector<1xf32>
      %271 = vector.multi_reduction <add>, %270, %cst_78 [1, 2] : vector<1x2x16xf32> to vector<1xf32>
      %272 = vector.shape_cast %271 : vector<1xf32> to vector<1x1x1xf32>
      %273 = vector.extract %272[0, 0, 0] : f32 from vector<1x1x1xf32>
      %274 = vector.broadcast %273 : f32 to vector<1x1xf32>
      %cst_79 = arith.constant -5.000000e-01 : f32
      %275 = vector.broadcast %cst_79 : f32 to vector<1x1xf32>
      %276 = arith.mulf %275, %274 : vector<1x1xf32>
      %c0_80 = arith.constant 0 : index
      %c0_81 = arith.constant 0 : index
      %277 = vector.load %arg13[%c0_80, %c0_81] : memref<5x3xf32, #tpu.memory_space<vmem>>, vector<5x3xf32>
      %c0_82 = arith.constant 0 : index
      %c0_83 = arith.constant 0 : index
      %278 = vector.load %arg14[%c0_82, %c0_83] : memref<5x3xf32, #tpu.memory_space<vmem>>, vector<5x3xf32>
      %279 = arith.subf %277, %278 : vector<5x3xf32>
      %280 = math.absf %279 : vector<5x3xf32>
      %281 = vector.shape_cast %280 : vector<5x3xf32> to vector<1x5x3xf32>
      %cst_84 = arith.constant dense<0.000000e+00> : vector<1xf32>
      %282 = vector.multi_reduction <add>, %281, %cst_84 [1, 2] : vector<1x5x3xf32> to vector<1xf32>
      %283 = vector.shape_cast %282 : vector<1xf32> to vector<1x1x1xf32>
      %284 = vector.extract %283[0, 0, 0] : f32 from vector<1x1x1xf32>
      %285 = vector.broadcast %284 : f32 to vector<1x1xf32>
      %c0_85 = arith.constant 0 : index
      %c0_86 = arith.constant 0 : index
      %286 = vector.load %arg16[%c0_85, %c0_86] : memref<8x128xf32, #tpu.memory_space<vmem>>, vector<1x128xf32>
      %c8_i32_87 = arith.constant 8 : i32
      %287 = vector.broadcast %c8_i32_87 : i32 to vector<1x128xi32>
      %288 = arith.cmpi eq, %3, %287 : vector<1x128xi32>
      %cst_88 = arith.constant 0.000000e+00 : f32
      %289 = vector.shape_cast %276 : vector<1x1xf32> to vector<1x1xf32>
      %290 = vector.broadcast %289 : vector<1x1xf32> to vector<1x128xf32>
      %291 = vector.broadcast %cst_88 : f32 to vector<1x128xf32>
      %292 = arith.select %288, %290, %291 : vector<1x128xi1>, vector<1x128xf32>
      %c9_i32 = arith.constant 9 : i32
      %293 = vector.broadcast %c9_i32 : i32 to vector<1x128xi32>
      %294 = arith.cmpi eq, %3, %293 : vector<1x128xi32>
      %cst_89 = arith.constant 0.000000e+00 : f32
      %295 = vector.shape_cast %285 : vector<1x1xf32> to vector<1x1xf32>
      %296 = vector.broadcast %295 : vector<1x1xf32> to vector<1x128xf32>
      %297 = vector.broadcast %cst_89 : f32 to vector<1x128xf32>
      %298 = arith.select %294, %296, %297 : vector<1x128xi1>, vector<1x128xf32>
      %299 = arith.addf %292, %298 : vector<1x128xf32>
      %300 = arith.addf %286, %299 : vector<1x128xf32>
      %c0_90 = arith.constant 0 : index
      %c0_91 = arith.constant 0 : index
      %301 = vector.load %arg16[%c0_90, %c0_91] : memref<8x128xf32, #tpu.memory_space<vmem>>, vector<1x128xf32>
      tpu.vector_store %arg16[%c0_90, %c0_91], %300 {strides = array<i32>} : memref<8x128xf32, #tpu.memory_space<vmem>>, vector<1x128xf32>,
    } else {
    }
    %c0_64 = arith.constant 0 : index
    %c0_65 = arith.constant 0 : index
    %253 = vector.load %arg16[%c0_64, %c0_65] : memref<8x128xf32, #tpu.memory_space<vmem>>, vector<1x128xf32>
    %254 = arith.addf %253, %214 : vector<1x128xf32>
    %c0_66 = arith.constant 0 : index
    %c0_67 = arith.constant 0 : index
    %255 = vector.load %arg16[%c0_66, %c0_67] : memref<8x128xf32, #tpu.memory_space<vmem>>, vector<1x128xf32>
    tpu.vector_store %arg16[%c0_66, %c0_67], %254 {strides = array<i32>} : memref<8x128xf32, #tpu.memory_space<vmem>>, vector<1x128xf32>,
    %c1 = arith.constant 1 : index
    %c0_68 = arith.constant 0 : index
    %256 = vector.load %arg16[%c1, %c0_68] : memref<8x128xf32, #tpu.memory_space<vmem>>, vector<1x128xf32>
    %257 = arith.addf %256, %247 : vector<1x128xf32>
    %c1_69 = arith.constant 1 : index
    %c0_70 = arith.constant 0 : index
    %258 = vector.load %arg16[%c1_69, %c0_70] : memref<8x128xf32, #tpu.memory_space<vmem>>, vector<1x128xf32>
    tpu.vector_store %arg16[%c1_69, %c0_70], %257 {strides = array<i32>} : memref<8x128xf32, #tpu.memory_space<vmem>>, vector<1x128xf32>,
    %c0_i32_71 = arith.constant 0 : i32
    %259 = arith.cmpi eq, %arg1, %c0_i32_71 : i32
    %260 = arith.extui %259 : i1 to i32
    %c0_i32_72 = arith.constant 0 : i32
    %261 = arith.cmpi ne, %260, %c0_i32_72 : i32
    scf.if %261 {
      %c0_73 = arith.constant 0 : index
      %c0_74 = arith.constant 0 : index
      %262 = vector.load %arg16[%c0_73, %c0_74] : memref<8x128xf32, #tpu.memory_space<vmem>>, vector<8x128xf32>
      %c0_75 = arith.constant 0 : index
      %c0_76 = arith.constant 0 : index
      %263 = vector.load %arg15[%c0_75, %c0_76] : memref<8x128xf32, #tpu.memory_space<vmem>>, vector<8x128xf32>
      tpu.vector_store %arg15[%c0_75, %c0_76], %262 {strides = array<i32>} : memref<8x128xf32, #tpu.memory_space<vmem>>, vector<8x128xf32>,
    } else {
    }
    return
  }
  func.func @transform_0(%arg0: i32, %arg1: i32) -> (i32, i32) {
    %c1_i32 = arith.constant 1 : i32
    %0 = arith.muli %arg0, %c1_i32 : i32
    %1 = arith.addi %0, %arg1 : i32
    %c0_i32 = arith.constant 0 : i32
    %c0_i32_0 = arith.constant 0 : i32
    return %1, %c0_i32 : i32, i32
  }
  func.func @transform_1(%arg0: i32, %arg1: i32) -> (i32, i32) {
    %c1_i32 = arith.constant 1 : i32
    %0 = arith.muli %arg0, %c1_i32 : i32
    %1 = arith.addi %0, %arg1 : i32
    %c0_i32 = arith.constant 0 : i32
    %c0_i32_0 = arith.constant 0 : i32
    return %1, %c0_i32 : i32, i32
  }
  func.func @transform_2(%arg0: i32, %arg1: i32) -> (i32, i32) {
    %c0_i32 = arith.constant 0 : i32
    %c0_i32_0 = arith.constant 0 : i32
    %c0_i32_1 = arith.constant 0 : i32
    return %c0_i32, %c0_i32_0 : i32, i32
  }
  func.func @transform_3(%arg0: i32, %arg1: i32) -> (i32, i32) {
    %c1_i32 = arith.constant 1 : i32
    %0 = arith.muli %arg0, %c1_i32 : i32
    %1 = arith.addi %0, %arg1 : i32
    %c0_i32 = arith.constant 0 : i32
    %c0_i32_0 = arith.constant 0 : i32
    return %1, %c0_i32 : i32, i32
  }
  func.func @transform_4(%arg0: i32, %arg1: i32) -> (i32, i32) {
    %c1_i32 = arith.constant 1 : i32
    %0 = arith.muli %arg0, %c1_i32 : i32
    %1 = arith.addi %0, %arg1 : i32
    %c0_i32 = arith.constant 0 : i32
    %c0_i32_0 = arith.constant 0 : i32
    return %1, %c0_i32 : i32, i32
  }
  func.func @transform_5(%arg0: i32, %arg1: i32) -> (i32, i32) {
    %c1_i32 = arith.constant 1 : i32
    %0 = arith.muli %arg0, %c1_i32 : i32
    %1 = arith.addi %0, %arg1 : i32
    %c0_i32 = arith.constant 0 : i32
    %c0_i32_0 = arith.constant 0 : i32
    return %1, %c0_i32 : i32, i32
  }
  func.func @transform_6(%arg0: i32, %arg1: i32) -> (i32, i32) {
    %c1_i32 = arith.constant 1 : i32
    %0 = arith.muli %arg0, %c1_i32 : i32
    %1 = arith.addi %0, %arg1 : i32
    %c0_i32 = arith.constant 0 : i32
    %c0_i32_0 = arith.constant 0 : i32
    return %1, %c0_i32 : i32, i32
  }
  func.func @transform_7(%arg0: i32, %arg1: i32) -> (i32, i32) {
    %c1_i32 = arith.constant 1 : i32
    %0 = arith.muli %arg0, %c1_i32 : i32
    %1 = arith.addi %0, %arg1 : i32
    %c0_i32 = arith.constant 0 : i32
    %c0_i32_0 = arith.constant 0 : i32
    return %1, %c0_i32 : i32, i32
  }
  func.func @transform_8(%arg0: i32, %arg1: i32) -> (i32, i32) {
    %c1_i32 = arith.constant 1 : i32
    %0 = arith.muli %arg0, %c1_i32 : i32
    %1 = arith.addi %0, %arg1 : i32
    %c0_i32 = arith.constant 0 : i32
    %c0_i32_0 = arith.constant 0 : i32
    return %1, %c0_i32 : i32, i32
  }
  func.func @transform_9(%arg0: i32, %arg1: i32) -> (i32, i32) {
    %c0_i32 = arith.constant 0 : i32
    %c0_i32_0 = arith.constant 0 : i32
    %c0_i32_1 = arith.constant 0 : i32
    return %c0_i32, %c0_i32_0 : i32, i32
  }
  func.func @transform_10(%arg0: i32, %arg1: i32) -> (i32, i32) {
    %c0_i32 = arith.constant 0 : i32
    %c0_i32_0 = arith.constant 0 : i32
    %c0_i32_1 = arith.constant 0 : i32
    return %c0_i32, %c0_i32_0 : i32, i32
  }
  func.func @transform_11(%arg0: i32, %arg1: i32) -> (i32, i32) {
    %c0_i32 = arith.constant 0 : i32
    %c0_i32_0 = arith.constant 0 : i32
    %c0_i32_1 = arith.constant 0 : i32
    return %c0_i32, %c0_i32_0 : i32, i32
  }
  func.func @transform_12(%arg0: i32, %arg1: i32) -> (i32, i32) {
    %c0_i32 = arith.constant 0 : i32
    %c0_i32_0 = arith.constant 0 : i32
    %c0_i32_1 = arith.constant 0 : i32
    return %c0_i32, %c0_i32_0 : i32, i32
  }
  func.func @transform_13(%arg0: i32, %arg1: i32) -> (i32, i32) {
    %c0_i32 = arith.constant 0 : i32
    %c0_i32_0 = arith.constant 0 : i32
    return %arg0, %c0_i32 : i32, i32
  }
}

</mosaic_0001>

<llo_original>
// kernel: tpu_custom_call.1
$region0: #{tpu_custom_call.1}
  #allocation0 [shape = 'u32[]', space=smem, size = 0x4, offset = 0x4, fixed_abs, tag = 'smem constant byte address 0x4 - core index']
  #allocation1 [shape = 'u32[144,128]{1,0:T(1,128)}', space=vmem, size = 0x12000, scoped, tag = 'internal scratch']
  #allocation2 [shape = 'f32[8,128]{1,0:T(8,128)}', space=vmem, size = 0x1000, scoped, tag = 'scratch operand']
  %s0 = inlined_call_operand.vmem [shape: f32[16,5], index: 0, kind: input, shape index: {}]
  %s1 = inlined_call_operand.vmem [shape: s32[16,1], index: 1, kind: input, shape index: {}]
  %s2 = inlined_call_operand.vmem [shape: f32[1,5], index: 2, kind: input, shape index: {}]
  %s3 = inlined_call_operand.vmem [shape: f32[16,8], index: 3, kind: input, shape index: {}]
  %s4 = inlined_call_operand.vmem [shape: s32[16,1], index: 4, kind: input, shape index: {}]
  %s5 = inlined_call_operand.vmem [shape: f32[16,8], index: 5, kind: input, shape index: {}]
  %s6 = inlined_call_operand.vmem [shape: s32[16,1], index: 6, kind: input, shape index: {}]
  %s7 = inlined_call_operand.vmem [shape: f32[16,2], index: 7, kind: input, shape index: {}]
  %s8 = inlined_call_operand.vmem [shape: s32[16,1], index: 8, kind: input, shape index: {}]
  %s9 = inlined_call_operand.vmem [shape: f32[2,16], index: 9, kind: input, shape index: {}]
  %s10 = inlined_call_operand.vmem [shape: f32[2,16], index: 10, kind: input, shape index: {}]
  %s11 = inlined_call_operand.vmem [shape: f32[5,3], index: 11, kind: input, shape index: {}]
  %s12 = inlined_call_operand.vmem [shape: f32[5,3], index: 12, kind: input, shape index: {}]
  %s13 = inlined_call_operand.hbm [shape: f32[8,128], index: 13, kind: output, shape index: {}]
  %s14 = sld [smem:[#allocation0]]
  $region74: #{tpu_custom_call.1} parent=0
    _
  %s16 = ssub.s32 1, %s14
  %s17 = scalar_select 0, %s16, %s14
  $region1: #{tpu_custom_call.1} parent=0
    #allocation3 [shape = 'u8[4096]{0}', space=vmem, size = 0x1000, scoped, tag = 'output window, operand 0, single buffered']
    #allocation4 [shape = 's32[1]{0}', space=sflag, size = 0x4, scoped, tag = 'scoped memory for tpu_custom_call.1']
    %18 = vsyncpa [#allocation4], 0
    // Predicated region
    $region2: #{tpu_custom_call.1} parent=1 // pred_check
      _
    $region3: #{tpu_custom_call.1} parent=1 // pred_check_branch
      %20 = sbr.rel (0) target = $region5
    $region4: #{tpu_custom_call.1} parent=1 // pred_region
      %s21 = sadd.s32 0, 0
      %s22 = smul.u32 2, %s21
      %p23 = scmp.lt.s32.totalorder %s22, 1
      %s24 = scalar_select %p23, %s22, 1
      %s25 = smul.addr %s24, 8
      %s26 = scalar_lea.vmem %s0, %s25
      %s27 = sadd.s32 0, 0
      %s28 = smul.u32 2, %s27
    $region5: #{tpu_custom_call.1} parent=1 // pred_fallthru
      _
    // Predicated region
    $region6: #{tpu_custom_call.1} parent=1 // pred_check
      _
    $region7: #{tpu_custom_call.1} parent=1 // pred_check_branch
      %30 = sbr.rel (0) target = $region9
    $region8: #{tpu_custom_call.1} parent=1 // pred_region
      %s31 = sadd.s32 0, 0
      %s32 = smul.u32 2, %s31
      %p33 = scmp.lt.s32.totalorder %s32, 1
      %s34 = scalar_select %p33, %s32, 1
      %s35 = smul.addr %s34, 8
      %s36 = scalar_lea.vmem %s1, %s35
      %s37 = sadd.s32 0, 0
      %s38 = smul.u32 2, %s37
    $region9: #{tpu_custom_call.1} parent=1 // pred_fallthru
      _
    // Predicated region
    $region10: #{tpu_custom_call.1} parent=1 // pred_check
      _
    $region11: #{tpu_custom_call.1} parent=1 // pred_check_branch
      %40 = sbr.rel (0) target = $region13
    $region12: #{tpu_custom_call.1} parent=1 // pred_region
      _
    $region13: #{tpu_custom_call.1} parent=1 // pred_fallthru
      _
    // Predicated region
    $region14: #{tpu_custom_call.1} parent=1 // pred_check
      _
    $region15: #{tpu_custom_call.1} parent=1 // pred_check_branch
      %42 = sbr.rel (0) target = $region17
    $region16: #{tpu_custom_call.1} parent=1 // pred_region
      %s43 = sadd.s32 0, 0
      %s44 = smul.u32 2, %s43
      %p45 = scmp.lt.s32.totalorder %s44, 1
      %s46 = scalar_select %p45, %s44, 1
      %s47 = smul.addr %s46, 8
      %s48 = scalar_lea.vmem %s3, %s47
      %s49 = sadd.s32 0, 0
      %s50 = smul.u32 2, %s49
    $region17: #{tpu_custom_call.1} parent=1 // pred_fallthru
      _
    // Predicated region
    $region18: #{tpu_custom_call.1} parent=1 // pred_check
      _
    $region19: #{tpu_custom_call.1} parent=1 // pred_check_branch
      %52 = sbr.rel (0) target = $region21
    $region20: #{tpu_custom_call.1} parent=1 // pred_region
      %s53 = sadd.s32 0, 0
      %s54 = smul.u32 2, %s53
      %p55 = scmp.lt.s32.totalorder %s54, 1
      %s56 = scalar_select %p55, %s54, 1
      %s57 = smul.addr %s56, 8
      %s58 = scalar_lea.vmem %s4, %s57
      %s59 = sadd.s32 0, 0
      %s60 = smul.u32 2, %s59
    $region21: #{tpu_custom_call.1} parent=1 // pred_fallthru
      _
    // Predicated region
    $region22: #{tpu_custom_call.1} parent=1 // pred_check
      _
    $region23: #{tpu_custom_call.1} parent=1 // pred_check_branch
      %62 = sbr.rel (0) target = $region25
    $region24: #{tpu_custom_call.1} parent=1 // pred_region
      %s63 = sadd.s32 0, 0
      %s64 = smul.u32 2, %s63
      %p65 = scmp.lt.s32.totalorder %s64, 1
      %s66 = scalar_select %p65, %s64, 1
      %s67 = smul.addr %s66, 8
      %s68 = scalar_lea.vmem %s5, %s67
      %s69 = sadd.s32 0, 0
      %s70 = smul.u32 2, %s69
    $region25: #{tpu_custom_call.1} parent=1 // pred_fallthru
      _
    // Predicated region
    $region26: #{tpu_custom_call.1} parent=1 // pred_check
      _
    $region27: #{tpu_custom_call.1} parent=1 // pred_check_branch
      %72 = sbr.rel (0) target = $region29
    $region28: #{tpu_custom_call.1} parent=1 // pred_region
      %s73 = sadd.s32 0, 0
      %s74 = smul.u32 2, %s73
      %p75 = scmp.lt.s32.totalorder %s74, 1
      %s76 = scalar_select %p75, %s74, 1
      %s77 = smul.addr %s76, 8
      %s78 = scalar_lea.vmem %s6, %s77
      %s79 = sadd.s32 0, 0
      %s80 = smul.u32 2, %s79
    $region29: #{tpu_custom_call.1} parent=1 // pred_fallthru
      _
    // Predicated region
    $region30: #{tpu_custom_call.1} parent=1 // pred_check
      _
    $region31: #{tpu_custom_call.1} parent=1 // pred_check_branch
      %82 = sbr.rel (0) target = $region33
    $region32: #{tpu_custom_call.1} parent=1 // pred_region
      %s83 = sadd.s32 0, 0
      %s84 = smul.u32 2, %s83
      %p85 = scmp.lt.s32.totalorder %s84, 1
      %s86 = scalar_select %p85, %s84, 1
      %s87 = smul.addr %s86, 8
      %s88 = scalar_lea.vmem %s7, %s87
      %s89 = sadd.s32 0, 0
      %s90 = smul.u32 2, %s89
    $region33: #{tpu_custom_call.1} parent=1 // pred_fallthru
      _
    // Predicated region
    $region34: #{tpu_custom_call.1} parent=1 // pred_check
      _
    $region35: #{tpu_custom_call.1} parent=1 // pred_check_branch
      %92 = sbr.rel (0) target = $region37
    $region36: #{tpu_custom_call.1} parent=1 // pred_region
      %s93 = sadd.s32 0, 0
      %s94 = smul.u32 2, %s93
      %p95 = scmp.lt.s32.totalorder %s94, 1
      %s96 = scalar_select %p95, %s94, 1
      %s97 = smul.addr %s96, 8
      %s98 = scalar_lea.vmem %s8, %s97
      %s99 = sadd.s32 0, 0
      %s100 = smul.u32 2, %s99
    $region37: #{tpu_custom_call.1} parent=1 // pred_fallthru
      _
    // Predicated region
    $region38: #{tpu_custom_call.1} parent=1 // pred_check
      _
    $region39: #{tpu_custom_call.1} parent=1 // pred_check_branch
      %102 = sbr.rel (0) target = $region41
    $region40: #{tpu_custom_call.1} parent=1 // pred_region
      _
    $region41: #{tpu_custom_call.1} parent=1 // pred_fallthru
      _
    // Predicated region
    $region42: #{tpu_custom_call.1} parent=1 // pred_check
      _
    $region43: #{tpu_custom_call.1} parent=1 // pred_check_branch
      %104 = sbr.rel (0) target = $region45
    $region44: #{tpu_custom_call.1} parent=1 // pred_region
      _
    $region45: #{tpu_custom_call.1} parent=1 // pred_fallthru
      _
    // Predicated region
    $region46: #{tpu_custom_call.1} parent=1 // pred_check
      _
    $region47: #{tpu_custom_call.1} parent=1 // pred_check_branch
      %106 = sbr.rel (0) target = $region49
    $region48: #{tpu_custom_call.1} parent=1 // pred_region
      _
    $region49: #{tpu_custom_call.1} parent=1 // pred_fallthru
      _
    // Predicated region
    $region50: #{tpu_custom_call.1} parent=1 // pred_check
      _
    $region51: #{tpu_custom_call.1} parent=1 // pred_check_branch
      %108 = sbr.rel (0) target = $region53
    $region52: #{tpu_custom_call.1} parent=1 // pred_region
      _
    $region53: #{tpu_custom_call.1} parent=1 // pred_fallthru
      _
    %s109 = sadd.s32 0, 0
    %s110 = smul.u32 2, %s109
    %p111 = scmp.lt.s32.totalorder %s110, 1
    %s112 = scalar_select %p111, %s110, 1
    %s113 = smul.addr %s112, 8
    %s114 = scalar_lea.vmem %s0, %s113
    %s115 = sadd.s32 0, 0
    %s116 = smul.u32 2, %s115
    %p117 = scmp.lt.s32.totalorder %s116, 1
    %s118 = scalar_select %p117, %s116, 1
    %s119 = smul.addr %s118, 8
    %s120 = scalar_lea.vmem %s1, %s119
    %s121 = sadd.s32 0, 0
    %s122 = smul.u32 2, %s121
    %p123 = scmp.lt.s32.totalorder %s122, 1
    %s124 = scalar_select %p123, %s122, 1
    %s125 = smul.addr %s124, 8
    %s126 = scalar_lea.vmem %s3, %s125
    %s127 = sadd.s32 0, 0
    %s128 = smul.u32 2, %s127
    %p129 = scmp.lt.s32.totalorder %s128, 1
    %s130 = scalar_select %p129, %s128, 1
    %s131 = smul.addr %s130, 8
    %s132 = scalar_lea.vmem %s4, %s131
    %s133 = sadd.s32 0, 0
    %s134 = smul.u32 2, %s133
    %p135 = scmp.lt.s32.totalorder %s134, 1
    %s136 = scalar_select %p135, %s134, 1
    %s137 = smul.addr %s136, 8
    %s138 = scalar_lea.vmem %s5, %s137
    %s139 = sadd.s32 0, 0
    %s140 = smul.u32 2, %s139
    %p141 = scmp.lt.s32.totalorder %s140, 1
    %s142 = scalar_select %p141, %s140, 1
    %s143 = smul.addr %s142, 8
    %s144 = scalar_lea.vmem %s6, %s143
    %s145 = sadd.s32 0, 0
    %s146 = smul.u32 2, %s145
    %p147 = scmp.lt.s32.totalorder %s146, 1
    %s148 = scalar_select %p147, %s146, 1
    %s149 = smul.addr %s148, 8
    %s150 = scalar_lea.vmem %s7, %s149
    %s151 = sadd.s32 0, 0
    %s152 = smul.u32 2, %s151
    %p153 = scmp.lt.s32.totalorder %s152, 1
    %s154 = scalar_select %p153, %s152, 1
    %s155 = smul.addr %s154, 8
    %s156 = scalar_lea.vmem %s8, %s155
    %s157 = sadd.s32 0, 0
    %s158 = smul.u32 2, %s157
    %p159 = scmp.lt.s32.totalorder %s158, 1
    %s160 = scalar_select %p159, %s158, 1
    %s161 = smul.addr %s160, 8
    %s162 = scalar_lea.vmem %s0, %s161
    %s163 = sadd.s32 0, 0
    %s164 = smul.u32 2, %s163
    %s165 = sadd.s32 0, 0
    %s166 = smul.u32 2, %s165
    %p167 = scmp.lt.s32.totalorder %s166, 1
    %s168 = scalar_select %p167, %s166, 1
    %s169 = smul.addr %s168, 8
    %s170 = scalar_lea.vmem %s1, %s169
    %s171 = sadd.s32 0, 0
    %s172 = smul.u32 2, %s171
    %s173 = sadd.s32 0, 0
    %s174 = smul.u32 2, %s173
    %p175 = scmp.lt.s32.totalorder %s174, 1
    %s176 = scalar_select %p175, %s174, 1
    %s177 = smul.addr %s176, 8
    %s178 = scalar_lea.vmem %s3, %s177
    %s179 = sadd.s32 0, 0
    %s180 = smul.u32 2, %s179
    %s181 = sadd.s32 0, 0
    %s182 = smul.u32 2, %s181
    %p183 = scmp.lt.s32.totalorder %s182, 1
    %s184 = scalar_select %p183, %s182, 1
    %s185 = smul.addr %s184, 8
    %s186 = scalar_lea.vmem %s4, %s185
    %s187 = sadd.s32 0, 0
    %s188 = smul.u32 2, %s187
    %s189 = sadd.s32 0, 0
    %s190 = smul.u32 2, %s189
    %p191 = scmp.lt.s32.totalorder %s190, 1
    %s192 = scalar_select %p191, %s190, 1
    %s193 = smul.addr %s192, 8
    %s194 = scalar_lea.vmem %s5, %s193
    %s195 = sadd.s32 0, 0
    %s196 = smul.u32 2, %s195
    %s197 = sadd.s32 0, 0
    %s198 = smul.u32 2, %s197
    %p199 = scmp.lt.s32.totalorder %s198, 1
    %s200 = scalar_select %p199, %s198, 1
    %s201 = smul.addr %s200, 8
    %s202 = scalar_lea.vmem %s6, %s201
    %s203 = sadd.s32 0, 0
    %s204 = smul.u32 2, %s203
    %s205 = sadd.s32 0, 0
    %s206 = smul.u32 2, %s205
    %p207 = scmp.lt.s32.totalorder %s206, 1
    %s208 = scalar_select %p207, %s206, 1
    %s209 = smul.addr %s208, 8
    %s210 = scalar_lea.vmem %s7, %s209
    %s211 = sadd.s32 0, 0
    %s212 = smul.u32 2, %s211
    %s213 = sadd.s32 0, 0
    %s214 = smul.u32 2, %s213
    %p215 = scmp.lt.s32.totalorder %s214, 1
    %s216 = scalar_select %p215, %s214, 1
    %s217 = smul.addr %s216, 8
    %s218 = scalar_lea.vmem %s8, %s217
    %s219 = sadd.s32 0, 0
    %s220 = smul.u32 2, %s219
    %p221 = scmp.eq.s32.totalorder 0, 0
    // Predicated region
    $region54: #{tpu_custom_call.1} parent=1 // pred_check
      %p222 = pneg %p221
    $region55: #{tpu_custom_call.1} parent=1 // pred_check_branch
      %224 = sbr.rel (%p222) target = $region57
    $region56: #{tpu_custom_call.1} parent=1 // pred_region
      %225 = vst [vmem:[#allocation2] sm:$0xff] 0.0
    $region57: #{tpu_custom_call.1} parent=1 // pred_fallthru
      _
    %v226 = vlaneseq
    %v227 = vand.u32 %v226, 127
    %v228 = vld [vmem:[%s162] sm:$0xff]
    %v229 = vld [vmem:[%s162 + $0x8] sm:$0xff]
    %v230 = vld [vmem:[%s170] sm:$0xff]
    %v231 = vld [vmem:[%s170 + $0x8] sm:$0xff]
    %v232 = vld [vmem:[%s2] sm:$0x1]
    %vm233 = vcmask 39936
    %v234 = vsel %vm233, %v228, -inf
    %235 = vmax.xlane.f32.xlu0 %v234
    %v236 = vpop.xlane.xlu0 %235
    %v237 = vsel %vm233, %v229, -inf
    %238 = vmax.xlane.f32.xlu0 %v237
    %v239 = vpop.xlane.xlu0 %238
    %v240 = vsub.f32 %v228, %v236
    %v241 = vsub.f32 %v229, %v239
    %v242 = vmul.f32 %v240, 1.442695
    %v243 = vpow.pop %v242
    %v244 = vmul.f32 %v241, 1.442695
    %v245 = vpow.pop %v244
    %v246 = vsel %vm233, %v243, 0.0
    %247 = vadd.xlane.f32.xlu0 %v246
    %v248 = vpop.xlane.xlu0 %247
    %v249 = vsel %vm233, %v245, 0.0
    %250 = vadd.xlane.f32.xlu0 %v249
    %v251 = vpop.xlane.xlu0 %250
    %v252 = vlog2.pop %v248
    %v253 = vmul.f32 %v252, 0.6931472
    %v254 = vlog2.pop %v251
    %v255 = vmul.f32 %v254, 0.6931472
    %v256 = vadd.f32 %v236, %v253
    %v257 = vadd.f32 %v239, %v255
    %258 = vset.pattern.permute.xlu0 0
    %259 = vperm.xlu0 %258, %v230
    %v260 = vpop.permute.xlu0 %259
    %261 = vset.pattern.permute.xlu0 0
    %262 = vperm.xlu0 %261, %v231
    %v263 = vpop.permute.xlu0 %262
    %vm264 = vcmp.eq.s32.totalorder %v227, %v260
    %vm265 = vcmp.eq.s32.totalorder %v227, %v263
    %v266 = vsel %vm264, 1, 0
    %v267 = vsel %vm265, 1, 0
    %v268 = vcvt.s32.f32 %v266
    %v269 = vcvt.s32.f32 %v267
    %v270 = vmul.f32 %v268, %v228
    %v271 = vmul.f32 %v269, %v229
    %v272 = vsel %vm233, %v270, 0.0
    %273 = vadd.xlane.f32.xlu0 %v272
    %v274 = vpop.xlane.xlu0 %273
    %v275 = vsel %vm233, %v271, 0.0
    %276 = vadd.xlane.f32.xlu0 %v275
    %v277 = vpop.xlane.xlu0 %276
    %v279 = vlaneseq
    %v280 = vshrl.u32 %v279, 7
    %v281 = vsub.s32 0, %v280
    %v282 = vrot.slane %v232, %v281
    %v284 = vmul.f32 %v268, %v282
    %v285 = vmul.f32 %v269, %v282
    %v286 = vsel %vm233, %v284, 0.0
    %287 = vadd.xlane.f32.xlu0 %v286
    %v288 = vpop.xlane.xlu0 %287
    %v289 = vsel %vm233, %v285, 0.0
    %290 = vadd.xlane.f32.xlu0 %v289
    %v291 = vpop.xlane.xlu0 %290
    %v292 = vsub.f32 %v256, %v274
    %v293 = vsub.f32 %v257, %v277
    %v294 = vmul.f32 %v292, %v288
    %v295 = vmul.f32 %v293, %v291
    %vm296 = vcmask 7168
    %v297 = vsel %vm296, %v294, 0.0
    %v298 = vsel %vm296, %v295, 0.0
    %v299 = vadd.f32 %v297, %v298
    %300 = vadd.xlane.f32.xlu0 %v299
    %v301 = vpop.xlane.xlu0 %300
    %v302 = vrot.slane %v301, 4
    %v303 = vadd.f32 %v301, %v302
    %v304 = vrot.slane %v303, 2
    %v305 = vadd.f32 %v303, %v304
    %v306 = vrot.slane %v305, 1
    %v307 = vadd.f32 %v305, %v306
    %s308 = vtos %v307
    %v309 = vsel %vm296, %v288, 0.0
    %v310 = vsel %vm296, %v291, 0.0
    %v311 = vadd.f32 %v309, %v310
    %312 = vadd.xlane.f32.xlu0 %v311
    %v313 = vpop.xlane.xlu0 %312
    %v314 = vrot.slane %v313, 4
    %v315 = vadd.f32 %v313, %v314
    %v316 = vrot.slane %v315, 2
    %v317 = vadd.f32 %v315, %v316
    %v318 = vrot.slane %v317, 1
    %v319 = vadd.f32 %v317, %v318
    %s320 = vtos %v319
    %v321 = vld [vmem:[%s178] sm:$0xff]
    %v322 = vld [vmem:[%s178 + $0x8] sm:$0xff]
    %v323 = vld [vmem:[%s186] sm:$0xff]
    %v324 = vld [vmem:[%s186 + $0x8] sm:$0xff]
    %vm325 = vcmask 64512
    %v326 = vsel %vm325, %v321, -inf
    %327 = vmax.xlane.f32.xlu0 %v326
    %v328 = vpop.xlane.xlu0 %327
    %v329 = vsel %vm325, %v322, -inf
    %330 = vmax.xlane.f32.xlu0 %v329
    %v331 = vpop.xlane.xlu0 %330
    %v332 = vsub.f32 %v321, %v328
    %v333 = vsub.f32 %v322, %v331
    %v334 = vmul.f32 %v332, 1.442695
    %v335 = vpow.pop %v334
    %v336 = vmul.f32 %v333, 1.442695
    %v337 = vpow.pop %v336
    %v338 = vsel %vm325, %v335, 0.0
    %339 = vadd.xlane.f32.xlu0 %v338
    %v340 = vpop.xlane.xlu0 %339
    %v341 = vsel %vm325, %v337, 0.0
    %342 = vadd.xlane.f32.xlu0 %v341
    %v343 = vpop.xlane.xlu0 %342
    %v344 = vlog2.pop %v340
    %v345 = vmul.f32 %v344, 0.6931472
    %v346 = vlog2.pop %v343
    %v347 = vmul.f32 %v346, 0.6931472
    %v348 = vadd.f32 %v328, %v345
    %v349 = vadd.f32 %v331, %v347
    %350 = vset.pattern.permute.xlu0 0
    %351 = vperm.xlu0 %350, %v323
    %v352 = vpop.permute.xlu0 %351
    %353 = vset.pattern.permute.xlu0 0
    %354 = vperm.xlu0 %353, %v324
    %v355 = vpop.permute.xlu0 %354
    %vm356 = vcmp.eq.s32.totalorder %v227, %v352
    %vm357 = vcmp.eq.s32.totalorder %v227, %v355
    %v358 = vsel %vm356, 1, 0
    %v359 = vsel %vm357, 1, 0
    %v360 = vcvt.s32.f32 %v358
    %v361 = vcvt.s32.f32 %v359
    %v362 = vmul.f32 %v360, %v321
    %v363 = vmul.f32 %v361, %v322
    %v364 = vsel %vm325, %v362, 0.0
    %365 = vadd.xlane.f32.xlu0 %v364
    %v366 = vpop.xlane.xlu0 %365
    %v367 = vsel %vm325, %v363, 0.0
    %368 = vadd.xlane.f32.xlu0 %v367
    %v369 = vpop.xlane.xlu0 %368
    %vm370 = vcmp.ge.s32.totalorder %v323, 0
    %vm371 = vcmp.ge.s32.totalorder %v324, 0
    %vm372 = vcmp.lt.s32.totalorder %v323, 8
    %vm373 = vcmp.lt.s32.totalorder %v324, 8
    %vm374 = vmand %vm370, %vm372
    %vm375 = vmand %vm371, %vm373
    %v376 = vsel %vm374, 1, 0
    %v377 = vsel %vm375, 1, 0
    %v378 = vcvt.s32.f32 %v376
    %v379 = vcvt.s32.f32 %v377
    %v380 = vsub.f32 %v348, %v366
    %v381 = vsub.f32 %v349, %v369
    %v382 = vmul.f32 %v380, %v378
    %v383 = vmul.f32 %v381, %v379
    %v384 = vsel %vm296, %v382, 0.0
    %v385 = vsel %vm296, %v383, 0.0
    %v386 = vadd.f32 %v384, %v385
    %387 = vadd.xlane.f32.xlu0 %v386
    %v388 = vpop.xlane.xlu0 %387
    %v389 = vrot.slane %v388, 4
    %v390 = vadd.f32 %v388, %v389
    %v391 = vrot.slane %v390, 2
    %v392 = vadd.f32 %v390, %v391
    %v393 = vrot.slane %v392, 1
    %v394 = vadd.f32 %v392, %v393
    %s395 = vtos %v394
    %v396 = vsel %vm296, %v378, 0.0
    %v397 = vsel %vm296, %v379, 0.0
    %v398 = vadd.f32 %v396, %v397
    %399 = vadd.xlane.f32.xlu0 %v398
    %v400 = vpop.xlane.xlu0 %399
    %v401 = vrot.slane %v400, 4
    %v402 = vadd.f32 %v400, %v401
    %v403 = vrot.slane %v402, 2
    %v404 = vadd.f32 %v402, %v403
    %v405 = vrot.slane %v404, 1
    %v406 = vadd.f32 %v404, %v405
    %s407 = vtos %v406
    %v408 = vld [vmem:[%s194] sm:$0xff]
    %v409 = vld [vmem:[%s194 + $0x8] sm:$0xff]
    %v410 = vld [vmem:[%s202] sm:$0xff]
    %v411 = vld [vmem:[%s202 + $0x8] sm:$0xff]
    %v412 = vsel %vm325, %v408, -inf
    %413 = vmax.xlane.f32.xlu0 %v412
    %v414 = vpop.xlane.xlu0 %413
    %v415 = vsel %vm325, %v409, -inf
    %416 = vmax.xlane.f32.xlu0 %v415
    %v417 = vpop.xlane.xlu0 %416
    %v418 = vsub.f32 %v408, %v414
    %v419 = vsub.f32 %v409, %v417
    %v420 = vmul.f32 %v418, 1.442695
    %v421 = vpow.pop %v420
    %v422 = vmul.f32 %v419, 1.442695
    %v423 = vpow.pop %v422
    %v424 = vsel %vm325, %v421, 0.0
    %425 = vadd.xlane.f32.xlu0 %v424
    %v426 = vpop.xlane.xlu0 %425
    %v427 = vsel %vm325, %v423, 0.0
    %428 = vadd.xlane.f32.xlu0 %v427
    %v429 = vpop.xlane.xlu0 %428
    %v430 = vlog2.pop %v426
    %v431 = vmul.f32 %v430, 0.6931472
    %v432 = vlog2.pop %v429
    %v433 = vmul.f32 %v432, 0.6931472
    %v434 = vadd.f32 %v414, %v431
    %v435 = vadd.f32 %v417, %v433
    %436 = vset.pattern.permute.xlu0 0
    %437 = vperm.xlu0 %436, %v410
    %v438 = vpop.permute.xlu0 %437
    %439 = vset.pattern.permute.xlu0 0
    %440 = vperm.xlu0 %439, %v411
    %v441 = vpop.permute.xlu0 %440
    %vm442 = vcmp.eq.s32.totalorder %v227, %v438
    %vm443 = vcmp.eq.s32.totalorder %v227, %v441
    %v444 = vsel %vm442, 1, 0
    %v445 = vsel %vm443, 1, 0
    %v446 = vcvt.s32.f32 %v444
    %v447 = vcvt.s32.f32 %v445
    %v448 = vmul.f32 %v446, %v408
    %v449 = vmul.f32 %v447, %v409
    %v450 = vsel %vm325, %v448, 0.0
    %451 = vadd.xlane.f32.xlu0 %v450
    %v452 = vpop.xlane.xlu0 %451
    %v453 = vsel %vm325, %v449, 0.0
    %454 = vadd.xlane.f32.xlu0 %v453
    %v455 = vpop.xlane.xlu0 %454
    %vm456 = vcmp.ge.s32.totalorder %v410, 0
    %vm457 = vcmp.ge.s32.totalorder %v411, 0
    %vm458 = vcmp.lt.s32.totalorder %v410, 8
    %vm459 = vcmp.lt.s32.totalorder %v411, 8
    %vm460 = vmand %vm456, %vm458
    %vm461 = vmand %vm457, %vm459
    %v462 = vsel %vm460, 1, 0
    %v463 = vsel %vm461, 1, 0
    %v464 = vcvt.s32.f32 %v462
    %v465 = vcvt.s32.f32 %v463
    %v466 = vsub.f32 %v434, %v452
    %v467 = vsub.f32 %v435, %v455
    %v468 = vmul.f32 %v466, %v464
    %v469 = vmul.f32 %v467, %v465
    %v470 = vsel %vm296, %v468, 0.0
    %v471 = vsel %vm296, %v469, 0.0
    %v472 = vadd.f32 %v470, %v471
    %473 = vadd.xlane.f32.xlu0 %v472
    %v474 = vpop.xlane.xlu0 %473
    %v475 = vrot.slane %v474, 4
    %v476 = vadd.f32 %v474, %v475
    %v477 = vrot.slane %v476, 2
    %v478 = vadd.f32 %v476, %v477
    %v479 = vrot.slane %v478, 1
    %v480 = vadd.f32 %v478, %v479
    %s481 = vtos %v480
    %v482 = vsel %vm296, %v464, 0.0
    %v483 = vsel %vm296, %v465, 0.0
    %v484 = vadd.f32 %v482, %v483
    %485 = vadd.xlane.f32.xlu0 %v484
    %v486 = vpop.xlane.xlu0 %485
    %v487 = vrot.slane %v486, 4
    %v488 = vadd.f32 %v486, %v487
    %v489 = vrot.slane %v488, 2
    %v490 = vadd.f32 %v488, %v489
    %v491 = vrot.slane %v490, 1
    %v492 = vadd.f32 %v490, %v491
    %s493 = vtos %v492
    %v494 = vld [vmem:[%s210] sm:$0xff]
    %v495 = vld [vmem:[%s210 + $0x8] sm:$0xff]
    %v496 = vld [vmem:[%s218] sm:$0xff]
    %v497 = vld [vmem:[%s218 + $0x8] sm:$0xff]
    %v498 = vxor.u32 %v494, 2147483648
    %v499 = vxor.u32 %v495, 2147483648
    %v500 = vmul.f32 %v498, 1.442695
    %v501 = vpow.pop %v500
    %v502 = vmul.f32 %v499, 1.442695
    %v503 = vpow.pop %v502
    %v504 = vadd.f32 %v501, 1.0
    %v505 = vadd.f32 %v503, 1.0
    %v506 = vrcp.pop %v504
    %v507 = vmul.f32 1.0, %v506
    %v508 = vrcp.pop %v505
    %v509 = vmul.f32 1.0, %v508
    %vm510 = vcmask 15360
    %v511 = vsel %vm510, %v507, -inf
    %512 = vmax.xlane.f32.xlu0 %v511
    %v513 = vpop.xlane.xlu0 %512
    %v514 = vsel %vm510, %v509, -inf
    %515 = vmax.xlane.f32.xlu0 %v514
    %v516 = vpop.xlane.xlu0 %515
    %v517 = vsub.f32 %v507, %v513
    %v518 = vsub.f32 %v509, %v516
    %v519 = vmul.f32 %v517, 1.442695
    %v520 = vpow.pop %v519
    %v521 = vmul.f32 %v518, 1.442695
    %v522 = vpow.pop %v521
    %v523 = vsel %vm510, %v520, 0.0
    %524 = vadd.xlane.f32.xlu0 %v523
    %v525 = vpop.xlane.xlu0 %524
    %v526 = vsel %vm510, %v522, 0.0
    %527 = vadd.xlane.f32.xlu0 %v526
    %v528 = vpop.xlane.xlu0 %527
    %v529 = vlog2.pop %v525
    %v530 = vmul.f32 %v529, 0.6931472
    %v531 = vlog2.pop %v528
    %v532 = vmul.f32 %v531, 0.6931472
    %v533 = vadd.f32 %v513, %v530
    %v534 = vadd.f32 %v516, %v532
    %535 = vset.pattern.permute.xlu0 0
    %536 = vperm.xlu0 %535, %v496
    %v537 = vpop.permute.xlu0 %536
    %538 = vset.pattern.permute.xlu0 0
    %539 = vperm.xlu0 %538, %v497
    %v540 = vpop.permute.xlu0 %539
    %vm541 = vcmp.eq.s32.totalorder %v227, %v537
    %vm542 = vcmp.eq.s32.totalorder %v227, %v540
    %v543 = vsel %vm541, 1, 0
    %v544 = vsel %vm542, 1, 0
    %v545 = vcvt.s32.f32 %v543
    %v546 = vcvt.s32.f32 %v544
    %v547 = vmul.f32 %v545, %v507
    %v548 = vmul.f32 %v546, %v509
    %v549 = vsel %vm510, %v547, 0.0
    %550 = vadd.xlane.f32.xlu0 %v549
    %v551 = vpop.xlane.xlu0 %550
    %v552 = vsel %vm510, %v548, 0.0
    %553 = vadd.xlane.f32.xlu0 %v552
    %v554 = vpop.xlane.xlu0 %553
    %vm555 = vcmp.ge.s32.totalorder %v496, 0
    %vm556 = vcmp.ge.s32.totalorder %v497, 0
    %vm557 = vcmp.lt.s32.totalorder %v496, 2
    %vm558 = vcmp.lt.s32.totalorder %v497, 2
    %vm559 = vmand %vm555, %vm557
    %vm560 = vmand %vm556, %vm558
    %v561 = vsel %vm559, 1, 0
    %v562 = vsel %vm560, 1, 0
    %v563 = vcvt.s32.f32 %v561
    %v564 = vcvt.s32.f32 %v562
    %v565 = vsub.f32 %v533, %v551
    %v566 = vsub.f32 %v534, %v554
    %v567 = vmul.f32 %v565, %v563
    %v568 = vmul.f32 %v566, %v564
    %v569 = vsel %vm296, %v567, 0.0
    %v570 = vsel %vm296, %v568, 0.0
    %v571 = vadd.f32 %v569, %v570
    %572 = vadd.xlane.f32.xlu0 %v571
    %v573 = vpop.xlane.xlu0 %572
    %v574 = vrot.slane %v573, 4
    %v575 = vadd.f32 %v573, %v574
    %v576 = vrot.slane %v575, 2
    %v577 = vadd.f32 %v575, %v576
    %v578 = vrot.slane %v577, 1
    %v579 = vadd.f32 %v577, %v578
    %s580 = vtos %v579
    %v581 = vsel %vm296, %v563, 0.0
    %v582 = vsel %vm296, %v564, 0.0
    %v583 = vadd.f32 %v581, %v582
    %584 = vadd.xlane.f32.xlu0 %v583
    %v585 = vpop.xlane.xlu0 %584
    %v586 = vrot.slane %v585, 4
    %v587 = vadd.f32 %v585, %v586
    %v588 = vrot.slane %v587, 2
    %v589 = vadd.f32 %v587, %v588
    %v590 = vrot.slane %v589, 1
    %v591 = vadd.f32 %v589, %v590
    %s592 = vtos %v591
    %vm593 = vcmp.eq.s32.totalorder %v227, 0
    %v594 = vstv %s308
    %v595 = vsel %vm593, %v594, 0.0
    %v596 = vadd.f32 %v595, 0.0
    %vm597 = vcmp.eq.s32.totalorder %v227, 1
    %v598 = vstv %s320
    %v599 = vsel %vm597, %v598, 0.0
    %v600 = vadd.f32 %v596, %v599
    %vm601 = vcmp.eq.s32.totalorder %v227, 2
    %v602 = vstv %s395
    %v603 = vsel %vm601, %v602, 0.0
    %v604 = vadd.f32 %v600, %v603
    %vm605 = vcmp.eq.s32.totalorder %v227, 3
    %v606 = vstv %s407
    %v607 = vsel %vm605, %v606, 0.0
    %v608 = vadd.f32 %v604, %v607
    %vm609 = vcmp.eq.s32.totalorder %v227, 4
    %v610 = vstv %s481
    %v611 = vsel %vm609, %v610, 0.0
    %v612 = vadd.f32 %v608, %v611
    %vm613 = vcmp.eq.s32.totalorder %v227, 5
    %v614 = vstv %s493
    %v615 = vsel %vm613, %v614, 0.0
    %v616 = vadd.f32 %v612, %v615
    %vm617 = vcmp.eq.s32.totalorder %v227, 6
    %v618 = vstv %s580
    %v619 = vsel %vm617, %v618, 0.0
    %v620 = vadd.f32 %v616, %v619
    %vm621 = vcmp.eq.s32.totalorder %v227, 7
    %v622 = vstv %s592
    %v623 = vsel %vm621, %v622, 0.0
    %v624 = vadd.f32 %v620, %v623
    %vm625 = vcmask 31744
    %v626 = vsel %vm625, %v228, -inf
    %627 = vmax.xlane.f32.xlu0 %v626
    %v628 = vpop.xlane.xlu0 %627
    %v629 = vsel %vm625, %v229, -inf
    %630 = vmax.xlane.f32.xlu0 %v629
    %v631 = vpop.xlane.xlu0 %630
    %vm632 = vcmp.ge.f32.partialorder %v628, %v228
    %vm633 = vcmp.ge.f32.partialorder %v631, %v229
    %v634 = vsel %vm632, 1, 0
    %v635 = vsel %vm633, 1, 0
    %v636 = vcvt.s32.f32 %v634
    %v637 = vcvt.s32.f32 %v635
    %v638 = vlaneseq
    %v639 = vshrl.u32 %v638, 7
    %v640 = vadd.s32 %v639, 8
    %s641 = sadd.s32 0, 0
    %s642 = smul.u32 %s641, 16
    %v643 = vstv %s642
    %v644 = vadd.s32 %v643, %v639
    %v645 = vadd.s32 %v643, %v640
    %v646 = vmul.u32 %v227, 8
    %vm647 = vcmp.ge.s32.totalorder %v644, %v646
    %vm648 = vcmp.ge.s32.totalorder %v645, %v646
    %v649 = vadd.s32 %v227, 1
    %v650 = vmul.u32 %v649, 8
    %vm651 = vcmp.lt.s32.totalorder %v644, %v650
    %vm652 = vcmp.lt.s32.totalorder %v645, %v650
    %vm653 = vmand %vm647, %vm651
    %vm654 = vmand %vm648, %vm652
    %656 = vset.pattern.permute.xlu0 4
    %657 = vperm.xlu0 %656, %v636
    %v658 = vpop.permute.xlu0 %657
    %661 = vset.pattern.permute.xlu0 4
    %662 = vperm.xlu0 %661, %v637
    %v663 = vpop.permute.xlu0 %662
    %v665 = vsel %vm653, %v658, 0.0
    %v666 = vsel %vm654, %v663, 0.0
    %v667 = vadd.f32 %v665, %v666
    %v668 = vrot.slane %v667, 4
    %v669 = vadd.f32 %v667, %v668
    %v670 = vrot.slane %v669, 2
    %v671 = vadd.f32 %v669, %v670
    %v672 = vrot.slane %v671, 1
    %v673 = vadd.f32 %v671, %v672
    %p674 = scmp.eq.s32.totalorder 0, 0
    %p675 = pnand %p674, %p221
    %p676 = pneg %p675
    // Predicated region
    $region58: #{tpu_custom_call.1} parent=1 // pred_check
      _
    $region59: #{tpu_custom_call.1} parent=1 // pred_check_branch
      %678 = sbr.rel (%p675) target = $region61
    $region60: #{tpu_custom_call.1} parent=1 // pred_region
      %v679 = vld [vmem:[%s9] sm:$0x3]
      %v680 = vld [vmem:[%s10] sm:$0x3]
      %v681 = vadd.f32 %v680, 1.0
      %v682 = vmul.f32 %v679, %v679
      %v683 = vsub.f32 %v681, %v682
      %v684 = vmul.f32 %v680, 1.442695
      %v685 = vpow.pop %v684
      %v686 = vsub.f32 %v683, %v685
      %vm687 = vcmask 123904
      %v688 = vsel %vm687, %v686, 0.0
      %689 = vadd.xlane.f32.xlu0 %v688
      %v690 = vpop.xlane.xlu0 %689
      %v691 = vrot.slane %v690, 4
      %v692 = vadd.f32 %v690, %v691
      %v693 = vrot.slane %v692, 2
      %v694 = vadd.f32 %v692, %v693
      %v695 = vrot.slane %v694, 1
      %v696 = vadd.f32 %v694, %v695
      %s697 = vtos %v696
      %v698 = vstv %s697
      %v699 = vmul.f32 %v698, -0.5
      %v700 = vld [vmem:[%s11] sm:$0x1f]
      %v701 = vld [vmem:[%s12] sm:$0x1f]
      %v702 = vsub.f32 %v700, %v701
      %v703 = vand.u32 2147483647, %v702
      %vm704 = vcmask 20480
      %v705 = vsel %vm704, %v703, 0.0
      %706 = vadd.xlane.f32.xlu0 %v705
      %v707 = vpop.xlane.xlu0 %706
      %v708 = vrot.slane %v707, 4
      %v709 = vadd.f32 %v707, %v708
      %v710 = vrot.slane %v709, 2
      %v711 = vadd.f32 %v709, %v710
      %v712 = vrot.slane %v711, 1
      %v713 = vadd.f32 %v711, %v712
      %s714 = vtos %v713
      %v715 = vld [vmem:[#allocation2] sm:$0x1]
      %vm716 = vcmp.eq.s32.totalorder %v227, 8
      %v717 = vsel %vm716, %v699, 0.0
      %vm718 = vcmp.eq.s32.totalorder %v227, 9
      %v719 = vstv %s714
      %v720 = vsel %vm718, %v719, 0.0
      %v721 = vadd.f32 %v717, %v720
      %v722 = vadd.f32 %v715, %v721
      %723 = vst [vmem:[#allocation2] sm:$0x1] %v722
    $region61: #{tpu_custom_call.1} parent=1 // pred_fallthru
      _
    %v724 = vld [vmem:[#allocation2] sm:$0x1]
    %v725 = vadd.f32 %v724, %v624
    %726 = vst [vmem:[#allocation2] sm:$0x1] %v725
    %v727 = vld [vmem:[#allocation2 + $0x1] sm:$0x1]
    %v728 = vadd.f32 %v727, %v673
    %729 = vst [vmem:[#allocation2 + $0x1] sm:$0x1] %v728
    // Predicated region
    $region62: #{tpu_custom_call.1} parent=1 // pred_check
      %p730 = pneg %p221
    $region63: #{tpu_custom_call.1} parent=1 // pred_check_branch
      %732 = sbr.rel (%p730) target = $region65
    $region64: #{tpu_custom_call.1} parent=1 // pred_region
      %v733 = vld [vmem:[#allocation2] sm:$0xff]
      %734 = vst [vmem:[#allocation3] sm:$0xff] %v733
    $region65: #{tpu_custom_call.1} parent=1 // pred_fallthru
      _
    // Predicated region
    $region66: #{tpu_custom_call.1} parent=1 // pred_check
      _
    $region67: #{tpu_custom_call.1} parent=1 // pred_check_branch
      %736 = sbr.rel (0) target = $region69
    $region68: #{tpu_custom_call.1} parent=1 // pred_region
      %s738 = ssub.s32 128, 128
      %739 = vsyncadd [#allocation4], %s738
      %s741 = sshll.u32 [#allocation3], 4
      %s742 = int_to_ptr.vmem [resolvable:$true] %s741
      %744 = dma.vmem_to_hbm [thread:$0]  %s742, 128, %s13, [#allocation4]
    $region69: #{tpu_custom_call.1} parent=1 // pred_fallthru
      _
    // Predicated region
    $region70: #{tpu_custom_call.1} parent=1 // pred_check
      _
    $region71: #{tpu_custom_call.1} parent=1 // pred_check_branch
      %746 = sbr.rel (0) target = $region73
    $region72: #{tpu_custom_call.1} parent=1 // pred_region
      %747 = dma.done [#allocation4], 128
    $region73: #{tpu_custom_call.1} parent=1 // pred_fallthru
      _
    %748 = vsyncpa [#allocation4], 1

</llo_original>
